<compile_context>
chip_gen: v5e
topology: v5e:2x2
jax: 0.10.0
libtpu: 0.0.40
codegen_flags: <defaults>
</compile_context>

<pallas_src>
import functools

import jax
import jax.numpy as jnp
from jax.experimental import pallas as pl
from jax.experimental.pallas import tpu as pltpu

BP = 8  # sublane-aligned (padded) batch rows carried through the recurrence


# ----------------------------- fused Pallas kernel ---------------------------


def make_fused_kernel(T, H, L, R):
    """Build the fused GRU(+FC) kernel for static (time, hidden, layers, in-width)."""

    def kernel(x_ref, w_ref, b_ref, w1_ref, w2_ref, bfc_ref, out_ref, y_scr):
        # x_ref : (T*BP, R)   time-major, batch padded to BP, features padded to R
        # w_ref : (2L, R, 3H) [wih_0..wih_{L-1}, whh_0..whh_{L-1}] (rows zero-padded)
        # b_ref : (2L, 3H)    [bgi_0..bgi_{L-1}, bhn_0..bhn_{L-1}]
        #                     bgi = b_ih + [b_hh_r, b_hh_z, 0]; bhn = [0, 0, b_hh_n]
        # w1_ref: (H, 128)    FC1 weights
        # w2_ref: (128, 128)  FC2 weights, out lanes zero-padded to 128
        # bfc_ref: (2, 128)   [b1; b2 padded]
        # out_ref: (BP, 128)  padded logits
        # y_scr : (T*BP, R)   VMEM scratch for the inter-layer sequence
        h = jnp.zeros((BP, H), jnp.float32)
        for l in range(L):
            seq = x_ref[...] if l == 0 else y_scr[...]             # (T*BP, R)
            wih = w_ref[l]                                          # (R, 3H)
            whh = w_ref[L + l, :H, :]                               # (H, 3H)
            bgi = b_ref[l:l + 1, :]                                 # (1, 3H)
            # hidden-matmul bias ([0,0,b_hh_n]); broadcast hoisted out of loop
            bhn = jnp.broadcast_to(b_ref[L + l:L + l + 1, :], (BP, 3 * H))

            # --- input projection for the whole sequence, once per layer ---
            gi = jnp.dot(seq, wih, preferred_element_type=jnp.float32) + bgi

            h = jnp.zeros((BP, H), jnp.float32)
            write_y = l < L - 1                                     # last layer: h only
            for t in range(T):                                      # static unroll
                # single fused (BP,H)@(H,3H) hidden matmul per step
                gh = jnp.dot(h, whh, preferred_element_type=jnp.float32) + bhn
                gi_t = gi[t * BP:(t + 1) * BP]                      # sublane-aligned
                s = gi_t + gh                                       # full-vreg add
                rz = jax.nn.sigmoid(s[:, :2 * H])                   # one EUP pass [r|z]
                r = rz[:, :H]
                z = rz[:, H:]
                n = jnp.tanh(gi_t[:, 2 * H:] + r * gh[:, 2 * H:])
                h = (1.0 - z) * n + z * h
                if write_y:
                    if R > H:
                        hw = jnp.concatenate(
                            [h, jnp.zeros((BP, R - H), jnp.float32)], axis=1)
                    else:
                        hw = h
                    y_scr[pl.ds(t * BP, BP), :] = hw                # aligned store

        # --- FC head: Linear(H,128) -> ReLU -> Linear(128, 128-padded) ---
        z1 = jnp.maximum(
            jnp.dot(h, w1_ref[...], preferred_element_type=jnp.float32)
            + bfc_ref[0:1, :], 0.0)
        out_ref[...] = (jnp.dot(z1, w2_ref[...],
                                preferred_element_type=jnp.float32)
                        + bfc_ref[1:2, :])

    return kernel


# ------------------------------ wrapper --------------------------------------


def pack_params(params, features):
    """Repack PyTorch-layout params into a handful of padded kernel arrays."""
    gru = params["gru"]
    L = len(gru)
    H = gru[0]["w_hh_t"].shape[0]
    R = max(features, H)                       # common padded input width
    wih_list, whh_list, bgi_list, bhn_list = [], [], [], []
    for lp in gru:
        w_ih_t = lp["w_ih_t"]                  # (in, 3H), gates [r, z, n]
        in_dim = w_ih_t.shape[0]
        wih_list.append(jnp.pad(w_ih_t, ((0, R - in_dim), (0, 0))))
        whh_list.append(jnp.pad(lp["w_hh_t"], ((0, R - H), (0, 0))))
        b_ih, b_hh = lp["b_ih"], lp["b_hh"]
        # fold b_ih and the r/z parts of b_hh into the input projection bias
        bgi_list.append(b_ih + jnp.concatenate(
            [b_hh[:2 * H], jnp.zeros((H,), b_hh.dtype)]))
        # b_hh_n stays with the hidden matmul (inside the r-multiplication)
        bhn_list.append(jnp.concatenate(
            [jnp.zeros((2 * H,), b_hh.dtype), b_hh[2 * H:]]))
    w_all = jnp.stack(wih_list + whh_list)     # (2L, R, 3H)
    b_all = jnp.stack(bgi_list + bhn_list)     # (2L, 3H)

    fp = params["fc"]
    C = fp["w2_t"].shape[1]
    CP = 128
    assert C <= CP
    w2p = jnp.pad(fp["w2_t"], ((0, 0), (0, CP - C)))            # (128, 128)
    bfc = jnp.stack([fp["b1"], jnp.pad(fp["b2"], (0, CP - C))])  # (2, 128)
    return (w_all, b_all, fp["w1_t"], w2p, bfc)


@functools.partial(jax.jit, static_argnames=("num_classes",))
def gru_emotion_classifier_forward(x, packed, num_classes):
    """x: (batch, features, time_steps) -> logits (batch, num_classes)."""
    w_all, b_all, w1, w2p, bfc = packed
    B, F, T = x.shape
    assert B <= BP
    L2, R, H3 = w_all.shape
    L, H = L2 // 2, H3 // 3
    CP = w2p.shape[1]

    # x.permute(0,2,1) -> (B,T,F); time-major (T,B,F); pad batch->BP, feat->R
    x_tbf = jnp.transpose(x, (2, 0, 1))                            # (T, B, F)
    x_pad = jnp.pad(x_tbf, ((0, 0), (0, BP - B), (0, R - F)))      # (T, BP, R)
    x2d = x_pad.reshape(T * BP, R)

    vmem = pl.BlockSpec(memory_space=pltpu.MemorySpace.VMEM)
    out = pl.pallas_call(
        make_fused_kernel(T, H, L, R),
        out_shape=jax.ShapeDtypeStruct((BP, CP), jnp.float32),
        in_specs=[vmem] * 6,
        out_specs=vmem,
        scratch_shapes=[pltpu.VMEM((T * BP, R), jnp.float32)],
    )(x2d, w_all, b_all, w1, w2p, bfc)
    return out[:B, :num_classes]


# -------------------------- params / reference ------------------------------


def init_params(key, features, hidden, num_layers, num_classes):
    params = {"gru": [], "fc": {}}
    k = key
    bound = float(1.0 / (hidden ** 0.5))
    for layer in range(num_layers):
        in_dim = features if layer == 0 else hidden
        k, k1, k2, k3, k4 = jax.random.split(k, 5)
        params["gru"].append({
            "w_ih_t": jax.random.uniform(k1, (in_dim, 3 * hidden), jnp.float32,
                                         -bound, bound),
            "w_hh_t": jax.random.uniform(k2, (hidden, 3 * hidden), jnp.float32,
                                         -bound, bound),
            "b_ih": jax.random.uniform(k3, (3 * hidden,), jnp.float32,
                                       -bound, bound),
            "b_hh": jax.random.uniform(k4, (3 * hidden,), jnp.float32,
                                       -bound, bound),
        })
    b1 = float(1.0 / (hidden ** 0.5))
    b2 = float(1.0 / (128.0 ** 0.5))
    k, k1, k2, k3, k4 = jax.random.split(k, 5)
    params["fc"] = {
        "w1_t": jax.random.uniform(k1, (hidden, 128), jnp.float32, -b1, b1),
        "b1": jax.random.uniform(k2, (128,), jnp.float32, -b1, b1),
        "w2_t": jax.random.uniform(k3, (128, num_classes), jnp.float32, -b2, b2),
        "b2": jax.random.uniform(k4, (num_classes,), jnp.float32, -b2, b2),
    }
    return params


def reference_forward(x, params):
    """Pure-JAX reference implementing PyTorch GRU (eval) semantics."""
    x_btf = jnp.transpose(x, (0, 2, 1))
    B, T, _ = x_btf.shape
    inp = x_btf
    h = None
    for lp in params["gru"]:
        H = lp["w_hh_t"].shape[0]
        h = jnp.zeros((B, H), jnp.float32)
        ys = []
        for t in range(T):
            gi = inp[:, t] @ lp["w_ih_t"] + lp["b_ih"]
            gh = h @ lp["w_hh_t"] + lp["b_hh"]
            r = jax.nn.sigmoid(gi[:, :H] + gh[:, :H])
            z = jax.nn.sigmoid(gi[:, H:2 * H] + gh[:, H:2 * H])
            n = jnp.tanh(gi[:, 2 * H:] + r * gh[:, 2 * H:])
            h = (1.0 - z) * n + z * h
            ys.append(h)
        inp = jnp.stack(ys, axis=1)
    fp = params["fc"]
    z = jnp.maximum(h @ fp["w1_t"] + fp["b1"], 0.0)
    return z @ fp["w2_t"] + fp["b2"]


# --------------------------------- main --------------------------------------

if __name__ == "__main__":
    BATCH = 2
    FEATURES = 16
    TIME_STEPS = 8
    HIDDEN = 32
    NUM_LAYERS = 3
    NUM_CLASSES = 6

    key = jax.random.PRNGKey(0)
    k_x, k_p = jax.random.split(key)
    x = jax.random.normal(k_x, (BATCH, FEATURES, TIME_STEPS), jnp.float32)
    params = init_params(k_p, FEATURES, HIDDEN, NUM_LAYERS, NUM_CLASSES)

    packed = pack_params(params, FEATURES)
    logits = gru_emotion_classifier_forward(x, packed, num_classes=NUM_CLASSES)
    logits = jax.block_until_ready(logits)

    ref = reference_forward(x, params)
    assert logits.shape == (BATCH, NUM_CLASSES)
    assert jnp.allclose(logits, ref, rtol=1e-5, atol=1e-5), (
        f"mismatch: max abs err {jnp.max(jnp.abs(logits - ref))}")

    print("KERNEL_OK")
</pallas_src>

<mosaic_0001>
module attributes {stable_mosaic.version = 11 : i64} {
  func.func @kernel(%arg0: memref<64x32xf32, #tpu.memory_space<vmem>>, %arg1: memref<6x32x96xf32, #tpu.memory_space<vmem>>, %arg2: memref<6x96xf32, #tpu.memory_space<vmem>>, %arg3: memref<32x128xf32, #tpu.memory_space<vmem>>, %arg4: memref<128x128xf32, #tpu.memory_space<vmem>>, %arg5: memref<2x128xf32, #tpu.memory_space<vmem>>, %arg6: memref<8x128xf32, #tpu.memory_space<vmem>>, %arg7: memref<64x32xf32, #tpu.memory_space<vmem>>) attributes {dimension_semantics = [], scalar_prefetch = 0 : i64, scratch_operands = 1 : i64, tpu.core_type = #tpu.core_type<tc>} {
    %c0 = arith.constant 0 : index
    %c0_0 = arith.constant 0 : index
    %0 = vector.load %arg0[%c0, %c0_0] : memref<64x32xf32, #tpu.memory_space<vmem>>, vector<64x32xf32>
    %c0_1 = arith.constant 0 : index
    %c0_2 = arith.constant 0 : index
    %c0_3 = arith.constant 0 : index
    %1 = vector.load %arg1[%c0_1, %c0_2, %c0_3] : memref<6x32x96xf32, #tpu.memory_space<vmem>>, vector<1x32x96xf32>
    %2 = vector.shape_cast %1 : vector<1x32x96xf32> to vector<32x96xf32>
    %c3 = arith.constant 3 : index
    %c0_4 = arith.constant 0 : index
    %c0_5 = arith.constant 0 : index
    %3 = vector.load %arg1[%c3, %c0_4, %c0_5] : memref<6x32x96xf32, #tpu.memory_space<vmem>>, vector<1x32x96xf32>
    %4 = vector.shape_cast %3 : vector<1x32x96xf32> to vector<32x96xf32>
    %c0_6 = arith.constant 0 : index
    %c0_7 = arith.constant 0 : index
    %5 = vector.load %arg2[%c0_6, %c0_7] : memref<6x96xf32, #tpu.memory_space<vmem>>, vector<1x96xf32>
    %c3_8 = arith.constant 3 : index
    %c0_9 = arith.constant 0 : index
    %6 = vector.load %arg2[%c3_8, %c0_9] : memref<6x96xf32, #tpu.memory_space<vmem>>, vector<1x96xf32>
    %7 = vector.shape_cast %6 : vector<1x96xf32> to vector<1x96xf32>
    %8 = vector.broadcast %7 : vector<1x96xf32> to vector<8x96xf32>
    %cst = arith.constant dense<0.000000e+00> : vector<64x96xf32>
    %9 = tpu.matmul %0, %2, %cst {dimension_numbers = #tpu.dot_dimension_numbers<[1], [0], [0], [1], [0, 0, 1, 1], [], []>} : vector<64x32xf32>, vector<32x96xf32>, vector<64x96xf32> -> vector<64x96xf32>
    %10 = vector.broadcast %5 : vector<1x96xf32> to vector<64x96xf32>
    %11 = arith.addf %9, %10 : vector<64x96xf32>
    %cst_10 = arith.constant 0.000000e+00 : f32
    %12 = vector.broadcast %cst_10 : f32 to vector<8x32xf32>
    %cst_11 = arith.constant dense<0.000000e+00> : vector<8x96xf32>
    %13 = tpu.matmul %12, %4, %cst_11 {dimension_numbers = #tpu.dot_dimension_numbers<[1], [0], [0], [1], [0, 0, 1, 1], [], []>} : vector<8x32xf32>, vector<32x96xf32>, vector<8x96xf32> -> vector<8x96xf32>
    %14 = arith.addf %13, %8 : vector<8x96xf32>
    %15 = vector.extract_strided_slice %11 {offsets = [0, 0], sizes = [8, 96], strides = [1, 1]} : vector<64x96xf32> to vector<8x96xf32>
    %16 = arith.addf %15, %14 : vector<8x96xf32>
    %17 = vector.extract_strided_slice %16 {offsets = [0, 0], sizes = [8, 64], strides = [1, 1]} : vector<8x96xf32> to vector<8x64xf32>
    %18 = arith.negf %17 : vector<8x64xf32>
    %19 = math.exp %18 : vector<8x64xf32>
    %cst_12 = arith.constant 1.000000e+00 : f32
    %20 = vector.broadcast %cst_12 : f32 to vector<8x64xf32>
    %21 = arith.addf %20, %19 : vector<8x64xf32>
    %22 = arith.divf %20, %21 : vector<8x64xf32>
    %23 = vector.extract_strided_slice %22 {offsets = [0, 0], sizes = [8, 32], strides = [1, 1]} : vector<8x64xf32> to vector<8x32xf32>
    %24 = vector.extract_strided_slice %22 {offsets = [0, 32], sizes = [8, 32], strides = [1, 1]} : vector<8x64xf32> to vector<8x32xf32>
    %25 = vector.extract_strided_slice %15 {offsets = [0, 64], sizes = [8, 32], strides = [1, 1]} : vector<8x96xf32> to vector<8x32xf32>
    %26 = vector.extract_strided_slice %14 {offsets = [0, 64], sizes = [8, 32], strides = [1, 1]} : vector<8x96xf32> to vector<8x32xf32>
    %27 = arith.mulf %23, %26 : vector<8x32xf32>
    %28 = arith.addf %25, %27 : vector<8x32xf32>
    %29 = math.tanh %28 : vector<8x32xf32>
    %cst_13 = arith.constant 1.000000e+00 : f32
    %30 = vector.broadcast %cst_13 : f32 to vector<8x32xf32>
    %31 = arith.subf %30, %24 : vector<8x32xf32>
    %32 = arith.mulf %31, %29 : vector<8x32xf32>
    %33 = arith.mulf %24, %12 : vector<8x32xf32>
    %34 = arith.addf %32, %33 : vector<8x32xf32>
    %c0_14 = arith.constant 0 : index
    %c0_15 = arith.constant 0 : index
    %35 = vector.load %arg7[%c0_14, %c0_15] : memref<64x32xf32, #tpu.memory_space<vmem>>, vector<8x32xf32>
    tpu.vector_store %arg7[%c0_14, %c0_15], %34 {strides = array<i32>} : memref<64x32xf32, #tpu.memory_space<vmem>>, vector<8x32xf32>,
    %cst_16 = arith.constant dense<0.000000e+00> : vector<8x96xf32>
    %36 = tpu.matmul %34, %4, %cst_16 {dimension_numbers = #tpu.dot_dimension_numbers<[1], [0], [0], [1], [0, 0, 1, 1], [], []>} : vector<8x32xf32>, vector<32x96xf32>, vector<8x96xf32> -> vector<8x96xf32>
    %37 = arith.addf %36, %8 : vector<8x96xf32>
    %38 = vector.extract_strided_slice %11 {offsets = [8, 0], sizes = [8, 96], strides = [1, 1]} : vector<64x96xf32> to vector<8x96xf32>
    %39 = arith.addf %38, %37 : vector<8x96xf32>
    %40 = vector.extract_strided_slice %39 {offsets = [0, 0], sizes = [8, 64], strides = [1, 1]} : vector<8x96xf32> to vector<8x64xf32>
    %41 = arith.negf %40 : vector<8x64xf32>
    %42 = math.exp %41 : vector<8x64xf32>
    %cst_17 = arith.constant 1.000000e+00 : f32
    %43 = vector.broadcast %cst_17 : f32 to vector<8x64xf32>
    %44 = arith.addf %43, %42 : vector<8x64xf32>
    %45 = arith.divf %43, %44 : vector<8x64xf32>
    %46 = vector.extract_strided_slice %45 {offsets = [0, 0], sizes = [8, 32], strides = [1, 1]} : vector<8x64xf32> to vector<8x32xf32>
    %47 = vector.extract_strided_slice %45 {offsets = [0, 32], sizes = [8, 32], strides = [1, 1]} : vector<8x64xf32> to vector<8x32xf32>
    %48 = vector.extract_strided_slice %38 {offsets = [0, 64], sizes = [8, 32], strides = [1, 1]} : vector<8x96xf32> to vector<8x32xf32>
    %49 = vector.extract_strided_slice %37 {offsets = [0, 64], sizes = [8, 32], strides = [1, 1]} : vector<8x96xf32> to vector<8x32xf32>
    %50 = arith.mulf %46, %49 : vector<8x32xf32>
    %51 = arith.addf %48, %50 : vector<8x32xf32>
    %52 = math.tanh %51 : vector<8x32xf32>
    %cst_18 = arith.constant 1.000000e+00 : f32
    %53 = vector.broadcast %cst_18 : f32 to vector<8x32xf32>
    %54 = arith.subf %53, %47 : vector<8x32xf32>
    %55 = arith.mulf %54, %52 : vector<8x32xf32>
    %56 = arith.mulf %47, %34 : vector<8x32xf32>
    %57 = arith.addf %55, %56 : vector<8x32xf32>
    %c8 = arith.constant 8 : index
    %c0_19 = arith.constant 0 : index
    %58 = vector.load %arg7[%c8, %c0_19] : memref<64x32xf32, #tpu.memory_space<vmem>>, vector<8x32xf32>
    tpu.vector_store %arg7[%c8, %c0_19], %57 {strides = array<i32>} : memref<64x32xf32, #tpu.memory_space<vmem>>, vector<8x32xf32>,
    %cst_20 = arith.constant dense<0.000000e+00> : vector<8x96xf32>
    %59 = tpu.matmul %57, %4, %cst_20 {dimension_numbers = #tpu.dot_dimension_numbers<[1], [0], [0], [1], [0, 0, 1, 1], [], []>} : vector<8x32xf32>, vector<32x96xf32>, vector<8x96xf32> -> vector<8x96xf32>
    %60 = arith.addf %59, %8 : vector<8x96xf32>
    %61 = vector.extract_strided_slice %11 {offsets = [16, 0], sizes = [8, 96], strides = [1, 1]} : vector<64x96xf32> to vector<8x96xf32>
    %62 = arith.addf %61, %60 : vector<8x96xf32>
    %63 = vector.extract_strided_slice %62 {offsets = [0, 0], sizes = [8, 64], strides = [1, 1]} : vector<8x96xf32> to vector<8x64xf32>
    %64 = arith.negf %63 : vector<8x64xf32>
    %65 = math.exp %64 : vector<8x64xf32>
    %cst_21 = arith.constant 1.000000e+00 : f32
    %66 = vector.broadcast %cst_21 : f32 to vector<8x64xf32>
    %67 = arith.addf %66, %65 : vector<8x64xf32>
    %68 = arith.divf %66, %67 : vector<8x64xf32>
    %69 = vector.extract_strided_slice %68 {offsets = [0, 0], sizes = [8, 32], strides = [1, 1]} : vector<8x64xf32> to vector<8x32xf32>
    %70 = vector.extract_strided_slice %68 {offsets = [0, 32], sizes = [8, 32], strides = [1, 1]} : vector<8x64xf32> to vector<8x32xf32>
    %71 = vector.extract_strided_slice %61 {offsets = [0, 64], sizes = [8, 32], strides = [1, 1]} : vector<8x96xf32> to vector<8x32xf32>
    %72 = vector.extract_strided_slice %60 {offsets = [0, 64], sizes = [8, 32], strides = [1, 1]} : vector<8x96xf32> to vector<8x32xf32>
    %73 = arith.mulf %69, %72 : vector<8x32xf32>
    %74 = arith.addf %71, %73 : vector<8x32xf32>
    %75 = math.tanh %74 : vector<8x32xf32>
    %cst_22 = arith.constant 1.000000e+00 : f32
    %76 = vector.broadcast %cst_22 : f32 to vector<8x32xf32>
    %77 = arith.subf %76, %70 : vector<8x32xf32>
    %78 = arith.mulf %77, %75 : vector<8x32xf32>
    %79 = arith.mulf %70, %57 : vector<8x32xf32>
    %80 = arith.addf %78, %79 : vector<8x32xf32>
    %c16 = arith.constant 16 : index
    %c0_23 = arith.constant 0 : index
    %81 = vector.load %arg7[%c16, %c0_23] : memref<64x32xf32, #tpu.memory_space<vmem>>, vector<8x32xf32>
    tpu.vector_store %arg7[%c16, %c0_23], %80 {strides = array<i32>} : memref<64x32xf32, #tpu.memory_space<vmem>>, vector<8x32xf32>,
    %cst_24 = arith.constant dense<0.000000e+00> : vector<8x96xf32>
    %82 = tpu.matmul %80, %4, %cst_24 {dimension_numbers = #tpu.dot_dimension_numbers<[1], [0], [0], [1], [0, 0, 1, 1], [], []>} : vector<8x32xf32>, vector<32x96xf32>, vector<8x96xf32> -> vector<8x96xf32>
    %83 = arith.addf %82, %8 : vector<8x96xf32>
    %84 = vector.extract_strided_slice %11 {offsets = [24, 0], sizes = [8, 96], strides = [1, 1]} : vector<64x96xf32> to vector<8x96xf32>
    %85 = arith.addf %84, %83 : vector<8x96xf32>
    %86 = vector.extract_strided_slice %85 {offsets = [0, 0], sizes = [8, 64], strides = [1, 1]} : vector<8x96xf32> to vector<8x64xf32>
    %87 = arith.negf %86 : vector<8x64xf32>
    %88 = math.exp %87 : vector<8x64xf32>
    %cst_25 = arith.constant 1.000000e+00 : f32
    %89 = vector.broadcast %cst_25 : f32 to vector<8x64xf32>
    %90 = arith.addf %89, %88 : vector<8x64xf32>
    %91 = arith.divf %89, %90 : vector<8x64xf32>
    %92 = vector.extract_strided_slice %91 {offsets = [0, 0], sizes = [8, 32], strides = [1, 1]} : vector<8x64xf32> to vector<8x32xf32>
    %93 = vector.extract_strided_slice %91 {offsets = [0, 32], sizes = [8, 32], strides = [1, 1]} : vector<8x64xf32> to vector<8x32xf32>
    %94 = vector.extract_strided_slice %84 {offsets = [0, 64], sizes = [8, 32], strides = [1, 1]} : vector<8x96xf32> to vector<8x32xf32>
    %95 = vector.extract_strided_slice %83 {offsets = [0, 64], sizes = [8, 32], strides = [1, 1]} : vector<8x96xf32> to vector<8x32xf32>
    %96 = arith.mulf %92, %95 : vector<8x32xf32>
    %97 = arith.addf %94, %96 : vector<8x32xf32>
    %98 = math.tanh %97 : vector<8x32xf32>
    %cst_26 = arith.constant 1.000000e+00 : f32
    %99 = vector.broadcast %cst_26 : f32 to vector<8x32xf32>
    %100 = arith.subf %99, %93 : vector<8x32xf32>
    %101 = arith.mulf %100, %98 : vector<8x32xf32>
    %102 = arith.mulf %93, %80 : vector<8x32xf32>
    %103 = arith.addf %101, %102 : vector<8x32xf32>
    %c24 = arith.constant 24 : index
    %c0_27 = arith.constant 0 : index
    %104 = vector.load %arg7[%c24, %c0_27] : memref<64x32xf32, #tpu.memory_space<vmem>>, vector<8x32xf32>
    tpu.vector_store %arg7[%c24, %c0_27], %103 {strides = array<i32>} : memref<64x32xf32, #tpu.memory_space<vmem>>, vector<8x32xf32>,
    %cst_28 = arith.constant dense<0.000000e+00> : vector<8x96xf32>
    %105 = tpu.matmul %103, %4, %cst_28 {dimension_numbers = #tpu.dot_dimension_numbers<[1], [0], [0], [1], [0, 0, 1, 1], [], []>} : vector<8x32xf32>, vector<32x96xf32>, vector<8x96xf32> -> vector<8x96xf32>
    %106 = arith.addf %105, %8 : vector<8x96xf32>
    %107 = vector.extract_strided_slice %11 {offsets = [32, 0], sizes = [8, 96], strides = [1, 1]} : vector<64x96xf32> to vector<8x96xf32>
    %108 = arith.addf %107, %106 : vector<8x96xf32>
    %109 = vector.extract_strided_slice %108 {offsets = [0, 0], sizes = [8, 64], strides = [1, 1]} : vector<8x96xf32> to vector<8x64xf32>
    %110 = arith.negf %109 : vector<8x64xf32>
    %111 = math.exp %110 : vector<8x64xf32>
    %cst_29 = arith.constant 1.000000e+00 : f32
    %112 = vector.broadcast %cst_29 : f32 to vector<8x64xf32>
    %113 = arith.addf %112, %111 : vector<8x64xf32>
    %114 = arith.divf %112, %113 : vector<8x64xf32>
    %115 = vector.extract_strided_slice %114 {offsets = [0, 0], sizes = [8, 32], strides = [1, 1]} : vector<8x64xf32> to vector<8x32xf32>
    %116 = vector.extract_strided_slice %114 {offsets = [0, 32], sizes = [8, 32], strides = [1, 1]} : vector<8x64xf32> to vector<8x32xf32>
    %117 = vector.extract_strided_slice %107 {offsets = [0, 64], sizes = [8, 32], strides = [1, 1]} : vector<8x96xf32> to vector<8x32xf32>
    %118 = vector.extract_strided_slice %106 {offsets = [0, 64], sizes = [8, 32], strides = [1, 1]} : vector<8x96xf32> to vector<8x32xf32>
    %119 = arith.mulf %115, %118 : vector<8x32xf32>
    %120 = arith.addf %117, %119 : vector<8x32xf32>
    %121 = math.tanh %120 : vector<8x32xf32>
    %cst_30 = arith.constant 1.000000e+00 : f32
    %122 = vector.broadcast %cst_30 : f32 to vector<8x32xf32>
    %123 = arith.subf %122, %116 : vector<8x32xf32>
    %124 = arith.mulf %123, %121 : vector<8x32xf32>
    %125 = arith.mulf %116, %103 : vector<8x32xf32>
    %126 = arith.addf %124, %125 : vector<8x32xf32>
    %c32 = arith.constant 32 : index
    %c0_31 = arith.constant 0 : index
    %127 = vector.load %arg7[%c32, %c0_31] : memref<64x32xf32, #tpu.memory_space<vmem>>, vector<8x32xf32>
    tpu.vector_store %arg7[%c32, %c0_31], %126 {strides = array<i32>} : memref<64x32xf32, #tpu.memory_space<vmem>>, vector<8x32xf32>,
    %cst_32 = arith.constant dense<0.000000e+00> : vector<8x96xf32>
    %128 = tpu.matmul %126, %4, %cst_32 {dimension_numbers = #tpu.dot_dimension_numbers<[1], [0], [0], [1], [0, 0, 1, 1], [], []>} : vector<8x32xf32>, vector<32x96xf32>, vector<8x96xf32> -> vector<8x96xf32>
    %129 = arith.addf %128, %8 : vector<8x96xf32>
    %130 = vector.extract_strided_slice %11 {offsets = [40, 0], sizes = [8, 96], strides = [1, 1]} : vector<64x96xf32> to vector<8x96xf32>
    %131 = arith.addf %130, %129 : vector<8x96xf32>
    %132 = vector.extract_strided_slice %131 {offsets = [0, 0], sizes = [8, 64], strides = [1, 1]} : vector<8x96xf32> to vector<8x64xf32>
    %133 = arith.negf %132 : vector<8x64xf32>
    %134 = math.exp %133 : vector<8x64xf32>
    %cst_33 = arith.constant 1.000000e+00 : f32
    %135 = vector.broadcast %cst_33 : f32 to vector<8x64xf32>
    %136 = arith.addf %135, %134 : vector<8x64xf32>
    %137 = arith.divf %135, %136 : vector<8x64xf32>
    %138 = vector.extract_strided_slice %137 {offsets = [0, 0], sizes = [8, 32], strides = [1, 1]} : vector<8x64xf32> to vector<8x32xf32>
    %139 = vector.extract_strided_slice %137 {offsets = [0, 32], sizes = [8, 32], strides = [1, 1]} : vector<8x64xf32> to vector<8x32xf32>
    %140 = vector.extract_strided_slice %130 {offsets = [0, 64], sizes = [8, 32], strides = [1, 1]} : vector<8x96xf32> to vector<8x32xf32>
    %141 = vector.extract_strided_slice %129 {offsets = [0, 64], sizes = [8, 32], strides = [1, 1]} : vector<8x96xf32> to vector<8x32xf32>
    %142 = arith.mulf %138, %141 : vector<8x32xf32>
    %143 = arith.addf %140, %142 : vector<8x32xf32>
    %144 = math.tanh %143 : vector<8x32xf32>
    %cst_34 = arith.constant 1.000000e+00 : f32
    %145 = vector.broadcast %cst_34 : f32 to vector<8x32xf32>
    %146 = arith.subf %145, %139 : vector<8x32xf32>
    %147 = arith.mulf %146, %144 : vector<8x32xf32>
    %148 = arith.mulf %139, %126 : vector<8x32xf32>
    %149 = arith.addf %147, %148 : vector<8x32xf32>
    %c40 = arith.constant 40 : index
    %c0_35 = arith.constant 0 : index
    %150 = vector.load %arg7[%c40, %c0_35] : memref<64x32xf32, #tpu.memory_space<vmem>>, vector<8x32xf32>
    tpu.vector_store %arg7[%c40, %c0_35], %149 {strides = array<i32>} : memref<64x32xf32, #tpu.memory_space<vmem>>, vector<8x32xf32>,
    %cst_36 = arith.constant dense<0.000000e+00> : vector<8x96xf32>
    %151 = tpu.matmul %149, %4, %cst_36 {dimension_numbers = #tpu.dot_dimension_numbers<[1], [0], [0], [1], [0, 0, 1, 1], [], []>} : vector<8x32xf32>, vector<32x96xf32>, vector<8x96xf32> -> vector<8x96xf32>
    %152 = arith.addf %151, %8 : vector<8x96xf32>
    %153 = vector.extract_strided_slice %11 {offsets = [48, 0], sizes = [8, 96], strides = [1, 1]} : vector<64x96xf32> to vector<8x96xf32>
    %154 = arith.addf %153, %152 : vector<8x96xf32>
    %155 = vector.extract_strided_slice %154 {offsets = [0, 0], sizes = [8, 64], strides = [1, 1]} : vector<8x96xf32> to vector<8x64xf32>
    %156 = arith.negf %155 : vector<8x64xf32>
    %157 = math.exp %156 : vector<8x64xf32>
    %cst_37 = arith.constant 1.000000e+00 : f32
    %158 = vector.broadcast %cst_37 : f32 to vector<8x64xf32>
    %159 = arith.addf %158, %157 : vector<8x64xf32>
    %160 = arith.divf %158, %159 : vector<8x64xf32>
    %161 = vector.extract_strided_slice %160 {offsets = [0, 0], sizes = [8, 32], strides = [1, 1]} : vector<8x64xf32> to vector<8x32xf32>
    %162 = vector.extract_strided_slice %160 {offsets = [0, 32], sizes = [8, 32], strides = [1, 1]} : vector<8x64xf32> to vector<8x32xf32>
    %163 = vector.extract_strided_slice %153 {offsets = [0, 64], sizes = [8, 32], strides = [1, 1]} : vector<8x96xf32> to vector<8x32xf32>
    %164 = vector.extract_strided_slice %152 {offsets = [0, 64], sizes = [8, 32], strides = [1, 1]} : vector<8x96xf32> to vector<8x32xf32>
    %165 = arith.mulf %161, %164 : vector<8x32xf32>
    %166 = arith.addf %163, %165 : vector<8x32xf32>
    %167 = math.tanh %166 : vector<8x32xf32>
    %cst_38 = arith.constant 1.000000e+00 : f32
    %168 = vector.broadcast %cst_38 : f32 to vector<8x32xf32>
    %169 = arith.subf %168, %162 : vector<8x32xf32>
    %170 = arith.mulf %169, %167 : vector<8x32xf32>
    %171 = arith.mulf %162, %149 : vector<8x32xf32>
    %172 = arith.addf %170, %171 : vector<8x32xf32>
    %c48 = arith.constant 48 : index
    %c0_39 = arith.constant 0 : index
    %173 = vector.load %arg7[%c48, %c0_39] : memref<64x32xf32, #tpu.memory_space<vmem>>, vector<8x32xf32>
    tpu.vector_store %arg7[%c48, %c0_39], %172 {strides = array<i32>} : memref<64x32xf32, #tpu.memory_space<vmem>>, vector<8x32xf32>,
    %cst_40 = arith.constant dense<0.000000e+00> : vector<8x96xf32>
    %174 = tpu.matmul %172, %4, %cst_40 {dimension_numbers = #tpu.dot_dimension_numbers<[1], [0], [0], [1], [0, 0, 1, 1], [], []>} : vector<8x32xf32>, vector<32x96xf32>, vector<8x96xf32> -> vector<8x96xf32>
    %175 = arith.addf %174, %8 : vector<8x96xf32>
    %176 = vector.extract_strided_slice %11 {offsets = [56, 0], sizes = [8, 96], strides = [1, 1]} : vector<64x96xf32> to vector<8x96xf32>
    %177 = arith.addf %176, %175 : vector<8x96xf32>
    %178 = vector.extract_strided_slice %177 {offsets = [0, 0], sizes = [8, 64], strides = [1, 1]} : vector<8x96xf32> to vector<8x64xf32>
    %179 = arith.negf %178 : vector<8x64xf32>
    %180 = math.exp %179 : vector<8x64xf32>
    %cst_41 = arith.constant 1.000000e+00 : f32
    %181 = vector.broadcast %cst_41 : f32 to vector<8x64xf32>
    %182 = arith.addf %181, %180 : vector<8x64xf32>
    %183 = arith.divf %181, %182 : vector<8x64xf32>
    %184 = vector.extract_strided_slice %183 {offsets = [0, 0], sizes = [8, 32], strides = [1, 1]} : vector<8x64xf32> to vector<8x32xf32>
    %185 = vector.extract_strided_slice %183 {offsets = [0, 32], sizes = [8, 32], strides = [1, 1]} : vector<8x64xf32> to vector<8x32xf32>
    %186 = vector.extract_strided_slice %176 {offsets = [0, 64], sizes = [8, 32], strides = [1, 1]} : vector<8x96xf32> to vector<8x32xf32>
    %187 = vector.extract_strided_slice %175 {offsets = [0, 64], sizes = [8, 32], strides = [1, 1]} : vector<8x96xf32> to vector<8x32xf32>
    %188 = arith.mulf %184, %187 : vector<8x32xf32>
    %189 = arith.addf %186, %188 : vector<8x32xf32>
    %190 = math.tanh %189 : vector<8x32xf32>
    %cst_42 = arith.constant 1.000000e+00 : f32
    %191 = vector.broadcast %cst_42 : f32 to vector<8x32xf32>
    %192 = arith.subf %191, %185 : vector<8x32xf32>
    %193 = arith.mulf %192, %190 : vector<8x32xf32>
    %194 = arith.mulf %185, %172 : vector<8x32xf32>
    %195 = arith.addf %193, %194 : vector<8x32xf32>
    %c56 = arith.constant 56 : index
    %c0_43 = arith.constant 0 : index
    %196 = vector.load %arg7[%c56, %c0_43] : memref<64x32xf32, #tpu.memory_space<vmem>>, vector<8x32xf32>
    tpu.vector_store %arg7[%c56, %c0_43], %195 {strides = array<i32>} : memref<64x32xf32, #tpu.memory_space<vmem>>, vector<8x32xf32>,
    %c0_44 = arith.constant 0 : index
    %c0_45 = arith.constant 0 : index
    %197 = vector.load %arg7[%c0_44, %c0_45] : memref<64x32xf32, #tpu.memory_space<vmem>>, vector<64x32xf32>
    %c1 = arith.constant 1 : index
    %c0_46 = arith.constant 0 : index
    %c0_47 = arith.constant 0 : index
    %198 = vector.load %arg1[%c1, %c0_46, %c0_47] : memref<6x32x96xf32, #tpu.memory_space<vmem>>, vector<1x32x96xf32>
    %199 = vector.shape_cast %198 : vector<1x32x96xf32> to vector<32x96xf32>
    %c4 = arith.constant 4 : index
    %c0_48 = arith.constant 0 : index
    %c0_49 = arith.constant 0 : index
    %200 = vector.load %arg1[%c4, %c0_48, %c0_49] : memref<6x32x96xf32, #tpu.memory_space<vmem>>, vector<1x32x96xf32>
    %201 = vector.shape_cast %200 : vector<1x32x96xf32> to vector<32x96xf32>
    %c1_50 = arith.constant 1 : index
    %c0_51 = arith.constant 0 : index
    %202 = vector.load %arg2[%c1_50, %c0_51] : memref<6x96xf32, #tpu.memory_space<vmem>>, vector<1x96xf32>
    %c4_52 = arith.constant 4 : index
    %c0_53 = arith.constant 0 : index
    %203 = vector.load %arg2[%c4_52, %c0_53] : memref<6x96xf32, #tpu.memory_space<vmem>>, vector<1x96xf32>
    %204 = vector.shape_cast %203 : vector<1x96xf32> to vector<1x96xf32>
    %205 = vector.broadcast %204 : vector<1x96xf32> to vector<8x96xf32>
    %cst_54 = arith.constant dense<0.000000e+00> : vector<64x96xf32>
    %206 = tpu.matmul %197, %199, %cst_54 {dimension_numbers = #tpu.dot_dimension_numbers<[1], [0], [0], [1], [0, 0, 1, 1], [], []>} : vector<64x32xf32>, vector<32x96xf32>, vector<64x96xf32> -> vector<64x96xf32>
    %207 = vector.broadcast %202 : vector<1x96xf32> to vector<64x96xf32>
    %208 = arith.addf %206, %207 : vector<64x96xf32>
    %cst_55 = arith.constant 0.000000e+00 : f32
    %209 = vector.broadcast %cst_55 : f32 to vector<8x32xf32>
    %cst_56 = arith.constant dense<0.000000e+00> : vector<8x96xf32>
    %210 = tpu.matmul %209, %201, %cst_56 {dimension_numbers = #tpu.dot_dimension_numbers<[1], [0], [0], [1], [0, 0, 1, 1], [], []>} : vector<8x32xf32>, vector<32x96xf32>, vector<8x96xf32> -> vector<8x96xf32>
    %211 = arith.addf %210, %205 : vector<8x96xf32>
    %212 = vector.extract_strided_slice %208 {offsets = [0, 0], sizes = [8, 96], strides = [1, 1]} : vector<64x96xf32> to vector<8x96xf32>
    %213 = arith.addf %212, %211 : vector<8x96xf32>
    %214 = vector.extract_strided_slice %213 {offsets = [0, 0], sizes = [8, 64], strides = [1, 1]} : vector<8x96xf32> to vector<8x64xf32>
    %215 = arith.negf %214 : vector<8x64xf32>
    %216 = math.exp %215 : vector<8x64xf32>
    %cst_57 = arith.constant 1.000000e+00 : f32
    %217 = vector.broadcast %cst_57 : f32 to vector<8x64xf32>
    %218 = arith.addf %217, %216 : vector<8x64xf32>
    %219 = arith.divf %217, %218 : vector<8x64xf32>
    %220 = vector.extract_strided_slice %219 {offsets = [0, 0], sizes = [8, 32], strides = [1, 1]} : vector<8x64xf32> to vector<8x32xf32>
    %221 = vector.extract_strided_slice %219 {offsets = [0, 32], sizes = [8, 32], strides = [1, 1]} : vector<8x64xf32> to vector<8x32xf32>
    %222 = vector.extract_strided_slice %212 {offsets = [0, 64], sizes = [8, 32], strides = [1, 1]} : vector<8x96xf32> to vector<8x32xf32>
    %223 = vector.extract_strided_slice %211 {offsets = [0, 64], sizes = [8, 32], strides = [1, 1]} : vector<8x96xf32> to vector<8x32xf32>
    %224 = arith.mulf %220, %223 : vector<8x32xf32>
    %225 = arith.addf %222, %224 : vector<8x32xf32>
    %226 = math.tanh %225 : vector<8x32xf32>
    %cst_58 = arith.constant 1.000000e+00 : f32
    %227 = vector.broadcast %cst_58 : f32 to vector<8x32xf32>
    %228 = arith.subf %227, %221 : vector<8x32xf32>
    %229 = arith.mulf %228, %226 : vector<8x32xf32>
    %230 = arith.mulf %221, %209 : vector<8x32xf32>
    %231 = arith.addf %229, %230 : vector<8x32xf32>
    %c0_59 = arith.constant 0 : index
    %c0_60 = arith.constant 0 : index
    %232 = vector.load %arg7[%c0_59, %c0_60] : memref<64x32xf32, #tpu.memory_space<vmem>>, vector<8x32xf32>
    tpu.vector_store %arg7[%c0_59, %c0_60], %231 {strides = array<i32>} : memref<64x32xf32, #tpu.memory_space<vmem>>, vector<8x32xf32>,
    %cst_61 = arith.constant dense<0.000000e+00> : vector<8x96xf32>
    %233 = tpu.matmul %231, %201, %cst_61 {dimension_numbers = #tpu.dot_dimension_numbers<[1], [0], [0], [1], [0, 0, 1, 1], [], []>} : vector<8x32xf32>, vector<32x96xf32>, vector<8x96xf32> -> vector<8x96xf32>
    %234 = arith.addf %233, %205 : vector<8x96xf32>
    %235 = vector.extract_strided_slice %208 {offsets = [8, 0], sizes = [8, 96], strides = [1, 1]} : vector<64x96xf32> to vector<8x96xf32>
    %236 = arith.addf %235, %234 : vector<8x96xf32>
    %237 = vector.extract_strided_slice %236 {offsets = [0, 0], sizes = [8, 64], strides = [1, 1]} : vector<8x96xf32> to vector<8x64xf32>
    %238 = arith.negf %237 : vector<8x64xf32>
    %239 = math.exp %238 : vector<8x64xf32>
    %cst_62 = arith.constant 1.000000e+00 : f32
    %240 = vector.broadcast %cst_62 : f32 to vector<8x64xf32>
    %241 = arith.addf %240, %239 : vector<8x64xf32>
    %242 = arith.divf %240, %241 : vector<8x64xf32>
    %243 = vector.extract_strided_slice %242 {offsets = [0, 0], sizes = [8, 32], strides = [1, 1]} : vector<8x64xf32> to vector<8x32xf32>
    %244 = vector.extract_strided_slice %242 {offsets = [0, 32], sizes = [8, 32], strides = [1, 1]} : vector<8x64xf32> to vector<8x32xf32>
    %245 = vector.extract_strided_slice %235 {offsets = [0, 64], sizes = [8, 32], strides = [1, 1]} : vector<8x96xf32> to vector<8x32xf32>
    %246 = vector.extract_strided_slice %234 {offsets = [0, 64], sizes = [8, 32], strides = [1, 1]} : vector<8x96xf32> to vector<8x32xf32>
    %247 = arith.mulf %243, %246 : vector<8x32xf32>
    %248 = arith.addf %245, %247 : vector<8x32xf32>
    %249 = math.tanh %248 : vector<8x32xf32>
    %cst_63 = arith.constant 1.000000e+00 : f32
    %250 = vector.broadcast %cst_63 : f32 to vector<8x32xf32>
    %251 = arith.subf %250, %244 : vector<8x32xf32>
    %252 = arith.mulf %251, %249 : vector<8x32xf32>
    %253 = arith.mulf %244, %231 : vector<8x32xf32>
    %254 = arith.addf %252, %253 : vector<8x32xf32>
    %c8_64 = arith.constant 8 : index
    %c0_65 = arith.constant 0 : index
    %255 = vector.load %arg7[%c8_64, %c0_65] : memref<64x32xf32, #tpu.memory_space<vmem>>, vector<8x32xf32>
    tpu.vector_store %arg7[%c8_64, %c0_65], %254 {strides = array<i32>} : memref<64x32xf32, #tpu.memory_space<vmem>>, vector<8x32xf32>,
    %cst_66 = arith.constant dense<0.000000e+00> : vector<8x96xf32>
    %256 = tpu.matmul %254, %201, %cst_66 {dimension_numbers = #tpu.dot_dimension_numbers<[1], [0], [0], [1], [0, 0, 1, 1], [], []>} : vector<8x32xf32>, vector<32x96xf32>, vector<8x96xf32> -> vector<8x96xf32>
    %257 = arith.addf %256, %205 : vector<8x96xf32>
    %258 = vector.extract_strided_slice %208 {offsets = [16, 0], sizes = [8, 96], strides = [1, 1]} : vector<64x96xf32> to vector<8x96xf32>
    %259 = arith.addf %258, %257 : vector<8x96xf32>
    %260 = vector.extract_strided_slice %259 {offsets = [0, 0], sizes = [8, 64], strides = [1, 1]} : vector<8x96xf32> to vector<8x64xf32>
    %261 = arith.negf %260 : vector<8x64xf32>
    %262 = math.exp %261 : vector<8x64xf32>
    %cst_67 = arith.constant 1.000000e+00 : f32
    %263 = vector.broadcast %cst_67 : f32 to vector<8x64xf32>
    %264 = arith.addf %263, %262 : vector<8x64xf32>
    %265 = arith.divf %263, %264 : vector<8x64xf32>
    %266 = vector.extract_strided_slice %265 {offsets = [0, 0], sizes = [8, 32], strides = [1, 1]} : vector<8x64xf32> to vector<8x32xf32>
    %267 = vector.extract_strided_slice %265 {offsets = [0, 32], sizes = [8, 32], strides = [1, 1]} : vector<8x64xf32> to vector<8x32xf32>
    %268 = vector.extract_strided_slice %258 {offsets = [0, 64], sizes = [8, 32], strides = [1, 1]} : vector<8x96xf32> to vector<8x32xf32>
    %269 = vector.extract_strided_slice %257 {offsets = [0, 64], sizes = [8, 32], strides = [1, 1]} : vector<8x96xf32> to vector<8x32xf32>
    %270 = arith.mulf %266, %269 : vector<8x32xf32>
    %271 = arith.addf %268, %270 : vector<8x32xf32>
    %272 = math.tanh %271 : vector<8x32xf32>
    %cst_68 = arith.constant 1.000000e+00 : f32
    %273 = vector.broadcast %cst_68 : f32 to vector<8x32xf32>
    %274 = arith.subf %273, %267 : vector<8x32xf32>
    %275 = arith.mulf %274, %272 : vector<8x32xf32>
    %276 = arith.mulf %267, %254 : vector<8x32xf32>
    %277 = arith.addf %275, %276 : vector<8x32xf32>
    %c16_69 = arith.constant 16 : index
    %c0_70 = arith.constant 0 : index
    %278 = vector.load %arg7[%c16_69, %c0_70] : memref<64x32xf32, #tpu.memory_space<vmem>>, vector<8x32xf32>
    tpu.vector_store %arg7[%c16_69, %c0_70], %277 {strides = array<i32>} : memref<64x32xf32, #tpu.memory_space<vmem>>, vector<8x32xf32>,
    %cst_71 = arith.constant dense<0.000000e+00> : vector<8x96xf32>
    %279 = tpu.matmul %277, %201, %cst_71 {dimension_numbers = #tpu.dot_dimension_numbers<[1], [0], [0], [1], [0, 0, 1, 1], [], []>} : vector<8x32xf32>, vector<32x96xf32>, vector<8x96xf32> -> vector<8x96xf32>
    %280 = arith.addf %279, %205 : vector<8x96xf32>
    %281 = vector.extract_strided_slice %208 {offsets = [24, 0], sizes = [8, 96], strides = [1, 1]} : vector<64x96xf32> to vector<8x96xf32>
    %282 = arith.addf %281, %280 : vector<8x96xf32>
    %283 = vector.extract_strided_slice %282 {offsets = [0, 0], sizes = [8, 64], strides = [1, 1]} : vector<8x96xf32> to vector<8x64xf32>
    %284 = arith.negf %283 : vector<8x64xf32>
    %285 = math.exp %284 : vector<8x64xf32>
    %cst_72 = arith.constant 1.000000e+00 : f32
    %286 = vector.broadcast %cst_72 : f32 to vector<8x64xf32>
    %287 = arith.addf %286, %285 : vector<8x64xf32>
    %288 = arith.divf %286, %287 : vector<8x64xf32>
    %289 = vector.extract_strided_slice %288 {offsets = [0, 0], sizes = [8, 32], strides = [1, 1]} : vector<8x64xf32> to vector<8x32xf32>
    %290 = vector.extract_strided_slice %288 {offsets = [0, 32], sizes = [8, 32], strides = [1, 1]} : vector<8x64xf32> to vector<8x32xf32>
    %291 = vector.extract_strided_slice %281 {offsets = [0, 64], sizes = [8, 32], strides = [1, 1]} : vector<8x96xf32> to vector<8x32xf32>
    %292 = vector.extract_strided_slice %280 {offsets = [0, 64], sizes = [8, 32], strides = [1, 1]} : vector<8x96xf32> to vector<8x32xf32>
    %293 = arith.mulf %289, %292 : vector<8x32xf32>
    %294 = arith.addf %291, %293 : vector<8x32xf32>
    %295 = math.tanh %294 : vector<8x32xf32>
    %cst_73 = arith.constant 1.000000e+00 : f32
    %296 = vector.broadcast %cst_73 : f32 to vector<8x32xf32>
    %297 = arith.subf %296, %290 : vector<8x32xf32>
    %298 = arith.mulf %297, %295 : vector<8x32xf32>
    %299 = arith.mulf %290, %277 : vector<8x32xf32>
    %300 = arith.addf %298, %299 : vector<8x32xf32>
    %c24_74 = arith.constant 24 : index
    %c0_75 = arith.constant 0 : index
    %301 = vector.load %arg7[%c24_74, %c0_75] : memref<64x32xf32, #tpu.memory_space<vmem>>, vector<8x32xf32>
    tpu.vector_store %arg7[%c24_74, %c0_75], %300 {strides = array<i32>} : memref<64x32xf32, #tpu.memory_space<vmem>>, vector<8x32xf32>,
    %cst_76 = arith.constant dense<0.000000e+00> : vector<8x96xf32>
    %302 = tpu.matmul %300, %201, %cst_76 {dimension_numbers = #tpu.dot_dimension_numbers<[1], [0], [0], [1], [0, 0, 1, 1], [], []>} : vector<8x32xf32>, vector<32x96xf32>, vector<8x96xf32> -> vector<8x96xf32>
    %303 = arith.addf %302, %205 : vector<8x96xf32>
    %304 = vector.extract_strided_slice %208 {offsets = [32, 0], sizes = [8, 96], strides = [1, 1]} : vector<64x96xf32> to vector<8x96xf32>
    %305 = arith.addf %304, %303 : vector<8x96xf32>
    %306 = vector.extract_strided_slice %305 {offsets = [0, 0], sizes = [8, 64], strides = [1, 1]} : vector<8x96xf32> to vector<8x64xf32>
    %307 = arith.negf %306 : vector<8x64xf32>
    %308 = math.exp %307 : vector<8x64xf32>
    %cst_77 = arith.constant 1.000000e+00 : f32
    %309 = vector.broadcast %cst_77 : f32 to vector<8x64xf32>
    %310 = arith.addf %309, %308 : vector<8x64xf32>
    %311 = arith.divf %309, %310 : vector<8x64xf32>
    %312 = vector.extract_strided_slice %311 {offsets = [0, 0], sizes = [8, 32], strides = [1, 1]} : vector<8x64xf32> to vector<8x32xf32>
    %313 = vector.extract_strided_slice %311 {offsets = [0, 32], sizes = [8, 32], strides = [1, 1]} : vector<8x64xf32> to vector<8x32xf32>
    %314 = vector.extract_strided_slice %304 {offsets = [0, 64], sizes = [8, 32], strides = [1, 1]} : vector<8x96xf32> to vector<8x32xf32>
    %315 = vector.extract_strided_slice %303 {offsets = [0, 64], sizes = [8, 32], strides = [1, 1]} : vector<8x96xf32> to vector<8x32xf32>
    %316 = arith.mulf %312, %315 : vector<8x32xf32>
    %317 = arith.addf %314, %316 : vector<8x32xf32>
    %318 = math.tanh %317 : vector<8x32xf32>
    %cst_78 = arith.constant 1.000000e+00 : f32
    %319 = vector.broadcast %cst_78 : f32 to vector<8x32xf32>
    %320 = arith.subf %319, %313 : vector<8x32xf32>
    %321 = arith.mulf %320, %318 : vector<8x32xf32>
    %322 = arith.mulf %313, %300 : vector<8x32xf32>
    %323 = arith.addf %321, %322 : vector<8x32xf32>
    %c32_79 = arith.constant 32 : index
    %c0_80 = arith.constant 0 : index
    %324 = vector.load %arg7[%c32_79, %c0_80] : memref<64x32xf32, #tpu.memory_space<vmem>>, vector<8x32xf32>
    tpu.vector_store %arg7[%c32_79, %c0_80], %323 {strides = array<i32>} : memref<64x32xf32, #tpu.memory_space<vmem>>, vector<8x32xf32>,
    %cst_81 = arith.constant dense<0.000000e+00> : vector<8x96xf32>
    %325 = tpu.matmul %323, %201, %cst_81 {dimension_numbers = #tpu.dot_dimension_numbers<[1], [0], [0], [1], [0, 0, 1, 1], [], []>} : vector<8x32xf32>, vector<32x96xf32>, vector<8x96xf32> -> vector<8x96xf32>
    %326 = arith.addf %325, %205 : vector<8x96xf32>
    %327 = vector.extract_strided_slice %208 {offsets = [40, 0], sizes = [8, 96], strides = [1, 1]} : vector<64x96xf32> to vector<8x96xf32>
    %328 = arith.addf %327, %326 : vector<8x96xf32>
    %329 = vector.extract_strided_slice %328 {offsets = [0, 0], sizes = [8, 64], strides = [1, 1]} : vector<8x96xf32> to vector<8x64xf32>
    %330 = arith.negf %329 : vector<8x64xf32>
    %331 = math.exp %330 : vector<8x64xf32>
    %cst_82 = arith.constant 1.000000e+00 : f32
    %332 = vector.broadcast %cst_82 : f32 to vector<8x64xf32>
    %333 = arith.addf %332, %331 : vector<8x64xf32>
    %334 = arith.divf %332, %333 : vector<8x64xf32>
    %335 = vector.extract_strided_slice %334 {offsets = [0, 0], sizes = [8, 32], strides = [1, 1]} : vector<8x64xf32> to vector<8x32xf32>
    %336 = vector.extract_strided_slice %334 {offsets = [0, 32], sizes = [8, 32], strides = [1, 1]} : vector<8x64xf32> to vector<8x32xf32>
    %337 = vector.extract_strided_slice %327 {offsets = [0, 64], sizes = [8, 32], strides = [1, 1]} : vector<8x96xf32> to vector<8x32xf32>
    %338 = vector.extract_strided_slice %326 {offsets = [0, 64], sizes = [8, 32], strides = [1, 1]} : vector<8x96xf32> to vector<8x32xf32>
    %339 = arith.mulf %335, %338 : vector<8x32xf32>
    %340 = arith.addf %337, %339 : vector<8x32xf32>
    %341 = math.tanh %340 : vector<8x32xf32>
    %cst_83 = arith.constant 1.000000e+00 : f32
    %342 = vector.broadcast %cst_83 : f32 to vector<8x32xf32>
    %343 = arith.subf %342, %336 : vector<8x32xf32>
    %344 = arith.mulf %343, %341 : vector<8x32xf32>
    %345 = arith.mulf %336, %323 : vector<8x32xf32>
    %346 = arith.addf %344, %345 : vector<8x32xf32>
    %c40_84 = arith.constant 40 : index
    %c0_85 = arith.constant 0 : index
    %347 = vector.load %arg7[%c40_84, %c0_85] : memref<64x32xf32, #tpu.memory_space<vmem>>, vector<8x32xf32>
    tpu.vector_store %arg7[%c40_84, %c0_85], %346 {strides = array<i32>} : memref<64x32xf32, #tpu.memory_space<vmem>>, vector<8x32xf32>,
    %cst_86 = arith.constant dense<0.000000e+00> : vector<8x96xf32>
    %348 = tpu.matmul %346, %201, %cst_86 {dimension_numbers = #tpu.dot_dimension_numbers<[1], [0], [0], [1], [0, 0, 1, 1], [], []>} : vector<8x32xf32>, vector<32x96xf32>, vector<8x96xf32> -> vector<8x96xf32>
    %349 = arith.addf %348, %205 : vector<8x96xf32>
    %350 = vector.extract_strided_slice %208 {offsets = [48, 0], sizes = [8, 96], strides = [1, 1]} : vector<64x96xf32> to vector<8x96xf32>
    %351 = arith.addf %350, %349 : vector<8x96xf32>
    %352 = vector.extract_strided_slice %351 {offsets = [0, 0], sizes = [8, 64], strides = [1, 1]} : vector<8x96xf32> to vector<8x64xf32>
    %353 = arith.negf %352 : vector<8x64xf32>
    %354 = math.exp %353 : vector<8x64xf32>
    %cst_87 = arith.constant 1.000000e+00 : f32
    %355 = vector.broadcast %cst_87 : f32 to vector<8x64xf32>
    %356 = arith.addf %355, %354 : vector<8x64xf32>
    %357 = arith.divf %355, %356 : vector<8x64xf32>
    %358 = vector.extract_strided_slice %357 {offsets = [0, 0], sizes = [8, 32], strides = [1, 1]} : vector<8x64xf32> to vector<8x32xf32>
    %359 = vector.extract_strided_slice %357 {offsets = [0, 32], sizes = [8, 32], strides = [1, 1]} : vector<8x64xf32> to vector<8x32xf32>
    %360 = vector.extract_strided_slice %350 {offsets = [0, 64], sizes = [8, 32], strides = [1, 1]} : vector<8x96xf32> to vector<8x32xf32>
    %361 = vector.extract_strided_slice %349 {offsets = [0, 64], sizes = [8, 32], strides = [1, 1]} : vector<8x96xf32> to vector<8x32xf32>
    %362 = arith.mulf %358, %361 : vector<8x32xf32>
    %363 = arith.addf %360, %362 : vector<8x32xf32>
    %364 = math.tanh %363 : vector<8x32xf32>
    %cst_88 = arith.constant 1.000000e+00 : f32
    %365 = vector.broadcast %cst_88 : f32 to vector<8x32xf32>
    %366 = arith.subf %365, %359 : vector<8x32xf32>
    %367 = arith.mulf %366, %364 : vector<8x32xf32>
    %368 = arith.mulf %359, %346 : vector<8x32xf32>
    %369 = arith.addf %367, %368 : vector<8x32xf32>
    %c48_89 = arith.constant 48 : index
    %c0_90 = arith.constant 0 : index
    %370 = vector.load %arg7[%c48_89, %c0_90] : memref<64x32xf32, #tpu.memory_space<vmem>>, vector<8x32xf32>
    tpu.vector_store %arg7[%c48_89, %c0_90], %369 {strides = array<i32>} : memref<64x32xf32, #tpu.memory_space<vmem>>, vector<8x32xf32>,
    %cst_91 = arith.constant dense<0.000000e+00> : vector<8x96xf32>
    %371 = tpu.matmul %369, %201, %cst_91 {dimension_numbers = #tpu.dot_dimension_numbers<[1], [0], [0], [1], [0, 0, 1, 1], [], []>} : vector<8x32xf32>, vector<32x96xf32>, vector<8x96xf32> -> vector<8x96xf32>
    %372 = arith.addf %371, %205 : vector<8x96xf32>
    %373 = vector.extract_strided_slice %208 {offsets = [56, 0], sizes = [8, 96], strides = [1, 1]} : vector<64x96xf32> to vector<8x96xf32>
    %374 = arith.addf %373, %372 : vector<8x96xf32>
    %375 = vector.extract_strided_slice %374 {offsets = [0, 0], sizes = [8, 64], strides = [1, 1]} : vector<8x96xf32> to vector<8x64xf32>
    %376 = arith.negf %375 : vector<8x64xf32>
    %377 = math.exp %376 : vector<8x64xf32>
    %cst_92 = arith.constant 1.000000e+00 : f32
    %378 = vector.broadcast %cst_92 : f32 to vector<8x64xf32>
    %379 = arith.addf %378, %377 : vector<8x64xf32>
    %380 = arith.divf %378, %379 : vector<8x64xf32>
    %381 = vector.extract_strided_slice %380 {offsets = [0, 0], sizes = [8, 32], strides = [1, 1]} : vector<8x64xf32> to vector<8x32xf32>
    %382 = vector.extract_strided_slice %380 {offsets = [0, 32], sizes = [8, 32], strides = [1, 1]} : vector<8x64xf32> to vector<8x32xf32>
    %383 = vector.extract_strided_slice %373 {offsets = [0, 64], sizes = [8, 32], strides = [1, 1]} : vector<8x96xf32> to vector<8x32xf32>
    %384 = vector.extract_strided_slice %372 {offsets = [0, 64], sizes = [8, 32], strides = [1, 1]} : vector<8x96xf32> to vector<8x32xf32>
    %385 = arith.mulf %381, %384 : vector<8x32xf32>
    %386 = arith.addf %383, %385 : vector<8x32xf32>
    %387 = math.tanh %386 : vector<8x32xf32>
    %cst_93 = arith.constant 1.000000e+00 : f32
    %388 = vector.broadcast %cst_93 : f32 to vector<8x32xf32>
    %389 = arith.subf %388, %382 : vector<8x32xf32>
    %390 = arith.mulf %389, %387 : vector<8x32xf32>
    %391 = arith.mulf %382, %369 : vector<8x32xf32>
    %392 = arith.addf %390, %391 : vector<8x32xf32>
    %c56_94 = arith.constant 56 : index
    %c0_95 = arith.constant 0 : index
    %393 = vector.load %arg7[%c56_94, %c0_95] : memref<64x32xf32, #tpu.memory_space<vmem>>, vector<8x32xf32>
    tpu.vector_store %arg7[%c56_94, %c0_95], %392 {strides = array<i32>} : memref<64x32xf32, #tpu.memory_space<vmem>>, vector<8x32xf32>,
    %c0_96 = arith.constant 0 : index
    %c0_97 = arith.constant 0 : index
    %394 = vector.load %arg7[%c0_96, %c0_97] : memref<64x32xf32, #tpu.memory_space<vmem>>, vector<64x32xf32>
    %c2 = arith.constant 2 : index
    %c0_98 = arith.constant 0 : index
    %c0_99 = arith.constant 0 : index
    %395 = vector.load %arg1[%c2, %c0_98, %c0_99] : memref<6x32x96xf32, #tpu.memory_space<vmem>>, vector<1x32x96xf32>
    %396 = vector.shape_cast %395 : vector<1x32x96xf32> to vector<32x96xf32>
    %c5 = arith.constant 5 : index
    %c0_100 = arith.constant 0 : index
    %c0_101 = arith.constant 0 : index
    %397 = vector.load %arg1[%c5, %c0_100, %c0_101] : memref<6x32x96xf32, #tpu.memory_space<vmem>>, vector<1x32x96xf32>
    %398 = vector.shape_cast %397 : vector<1x32x96xf32> to vector<32x96xf32>
    %c2_102 = arith.constant 2 : index
    %c0_103 = arith.constant 0 : index
    %399 = vector.load %arg2[%c2_102, %c0_103] : memref<6x96xf32, #tpu.memory_space<vmem>>, vector<1x96xf32>
    %c5_104 = arith.constant 5 : index
    %c0_105 = arith.constant 0 : index
    %400 = vector.load %arg2[%c5_104, %c0_105] : memref<6x96xf32, #tpu.memory_space<vmem>>, vector<1x96xf32>
    %401 = vector.shape_cast %400 : vector<1x96xf32> to vector<1x96xf32>
    %402 = vector.broadcast %401 : vector<1x96xf32> to vector<8x96xf32>
    %cst_106 = arith.constant dense<0.000000e+00> : vector<64x96xf32>
    %403 = tpu.matmul %394, %396, %cst_106 {dimension_numbers = #tpu.dot_dimension_numbers<[1], [0], [0], [1], [0, 0, 1, 1], [], []>} : vector<64x32xf32>, vector<32x96xf32>, vector<64x96xf32> -> vector<64x96xf32>
    %404 = vector.broadcast %399 : vector<1x96xf32> to vector<64x96xf32>
    %405 = arith.addf %403, %404 : vector<64x96xf32>
    %cst_107 = arith.constant 0.000000e+00 : f32
    %406 = vector.broadcast %cst_107 : f32 to vector<8x32xf32>
    %cst_108 = arith.constant dense<0.000000e+00> : vector<8x96xf32>
    %407 = tpu.matmul %406, %398, %cst_108 {dimension_numbers = #tpu.dot_dimension_numbers<[1], [0], [0], [1], [0, 0, 1, 1], [], []>} : vector<8x32xf32>, vector<32x96xf32>, vector<8x96xf32> -> vector<8x96xf32>
    %408 = arith.addf %407, %402 : vector<8x96xf32>
    %409 = vector.extract_strided_slice %405 {offsets = [0, 0], sizes = [8, 96], strides = [1, 1]} : vector<64x96xf32> to vector<8x96xf32>
    %410 = arith.addf %409, %408 : vector<8x96xf32>
    %411 = vector.extract_strided_slice %410 {offsets = [0, 0], sizes = [8, 64], strides = [1, 1]} : vector<8x96xf32> to vector<8x64xf32>
    %412 = arith.negf %411 : vector<8x64xf32>
    %413 = math.exp %412 : vector<8x64xf32>
    %cst_109 = arith.constant 1.000000e+00 : f32
    %414 = vector.broadcast %cst_109 : f32 to vector<8x64xf32>
    %415 = arith.addf %414, %413 : vector<8x64xf32>
    %416 = arith.divf %414, %415 : vector<8x64xf32>
    %417 = vector.extract_strided_slice %416 {offsets = [0, 0], sizes = [8, 32], strides = [1, 1]} : vector<8x64xf32> to vector<8x32xf32>
    %418 = vector.extract_strided_slice %416 {offsets = [0, 32], sizes = [8, 32], strides = [1, 1]} : vector<8x64xf32> to vector<8x32xf32>
    %419 = vector.extract_strided_slice %409 {offsets = [0, 64], sizes = [8, 32], strides = [1, 1]} : vector<8x96xf32> to vector<8x32xf32>
    %420 = vector.extract_strided_slice %408 {offsets = [0, 64], sizes = [8, 32], strides = [1, 1]} : vector<8x96xf32> to vector<8x32xf32>
    %421 = arith.mulf %417, %420 : vector<8x32xf32>
    %422 = arith.addf %419, %421 : vector<8x32xf32>
    %423 = math.tanh %422 : vector<8x32xf32>
    %cst_110 = arith.constant 1.000000e+00 : f32
    %424 = vector.broadcast %cst_110 : f32 to vector<8x32xf32>
    %425 = arith.subf %424, %418 : vector<8x32xf32>
    %426 = arith.mulf %425, %423 : vector<8x32xf32>
    %427 = arith.mulf %418, %406 : vector<8x32xf32>
    %428 = arith.addf %426, %427 : vector<8x32xf32>
    %cst_111 = arith.constant dense<0.000000e+00> : vector<8x96xf32>
    %429 = tpu.matmul %428, %398, %cst_111 {dimension_numbers = #tpu.dot_dimension_numbers<[1], [0], [0], [1], [0, 0, 1, 1], [], []>} : vector<8x32xf32>, vector<32x96xf32>, vector<8x96xf32> -> vector<8x96xf32>
    %430 = arith.addf %429, %402 : vector<8x96xf32>
    %431 = vector.extract_strided_slice %405 {offsets = [8, 0], sizes = [8, 96], strides = [1, 1]} : vector<64x96xf32> to vector<8x96xf32>
    %432 = arith.addf %431, %430 : vector<8x96xf32>
    %433 = vector.extract_strided_slice %432 {offsets = [0, 0], sizes = [8, 64], strides = [1, 1]} : vector<8x96xf32> to vector<8x64xf32>
    %434 = arith.negf %433 : vector<8x64xf32>
    %435 = math.exp %434 : vector<8x64xf32>
    %cst_112 = arith.constant 1.000000e+00 : f32
    %436 = vector.broadcast %cst_112 : f32 to vector<8x64xf32>
    %437 = arith.addf %436, %435 : vector<8x64xf32>
    %438 = arith.divf %436, %437 : vector<8x64xf32>
    %439 = vector.extract_strided_slice %438 {offsets = [0, 0], sizes = [8, 32], strides = [1, 1]} : vector<8x64xf32> to vector<8x32xf32>
    %440 = vector.extract_strided_slice %438 {offsets = [0, 32], sizes = [8, 32], strides = [1, 1]} : vector<8x64xf32> to vector<8x32xf32>
    %441 = vector.extract_strided_slice %431 {offsets = [0, 64], sizes = [8, 32], strides = [1, 1]} : vector<8x96xf32> to vector<8x32xf32>
    %442 = vector.extract_strided_slice %430 {offsets = [0, 64], sizes = [8, 32], strides = [1, 1]} : vector<8x96xf32> to vector<8x32xf32>
    %443 = arith.mulf %439, %442 : vector<8x32xf32>
    %444 = arith.addf %441, %443 : vector<8x32xf32>
    %445 = math.tanh %444 : vector<8x32xf32>
    %cst_113 = arith.constant 1.000000e+00 : f32
    %446 = vector.broadcast %cst_113 : f32 to vector<8x32xf32>
    %447 = arith.subf %446, %440 : vector<8x32xf32>
    %448 = arith.mulf %447, %445 : vector<8x32xf32>
    %449 = arith.mulf %440, %428 : vector<8x32xf32>
    %450 = arith.addf %448, %449 : vector<8x32xf32>
    %cst_114 = arith.constant dense<0.000000e+00> : vector<8x96xf32>
    %451 = tpu.matmul %450, %398, %cst_114 {dimension_numbers = #tpu.dot_dimension_numbers<[1], [0], [0], [1], [0, 0, 1, 1], [], []>} : vector<8x32xf32>, vector<32x96xf32>, vector<8x96xf32> -> vector<8x96xf32>
    %452 = arith.addf %451, %402 : vector<8x96xf32>
    %453 = vector.extract_strided_slice %405 {offsets = [16, 0], sizes = [8, 96], strides = [1, 1]} : vector<64x96xf32> to vector<8x96xf32>
    %454 = arith.addf %453, %452 : vector<8x96xf32>
    %455 = vector.extract_strided_slice %454 {offsets = [0, 0], sizes = [8, 64], strides = [1, 1]} : vector<8x96xf32> to vector<8x64xf32>
    %456 = arith.negf %455 : vector<8x64xf32>
    %457 = math.exp %456 : vector<8x64xf32>
    %cst_115 = arith.constant 1.000000e+00 : f32
    %458 = vector.broadcast %cst_115 : f32 to vector<8x64xf32>
    %459 = arith.addf %458, %457 : vector<8x64xf32>
    %460 = arith.divf %458, %459 : vector<8x64xf32>
    %461 = vector.extract_strided_slice %460 {offsets = [0, 0], sizes = [8, 32], strides = [1, 1]} : vector<8x64xf32> to vector<8x32xf32>
    %462 = vector.extract_strided_slice %460 {offsets = [0, 32], sizes = [8, 32], strides = [1, 1]} : vector<8x64xf32> to vector<8x32xf32>
    %463 = vector.extract_strided_slice %453 {offsets = [0, 64], sizes = [8, 32], strides = [1, 1]} : vector<8x96xf32> to vector<8x32xf32>
    %464 = vector.extract_strided_slice %452 {offsets = [0, 64], sizes = [8, 32], strides = [1, 1]} : vector<8x96xf32> to vector<8x32xf32>
    %465 = arith.mulf %461, %464 : vector<8x32xf32>
    %466 = arith.addf %463, %465 : vector<8x32xf32>
    %467 = math.tanh %466 : vector<8x32xf32>
    %cst_116 = arith.constant 1.000000e+00 : f32
    %468 = vector.broadcast %cst_116 : f32 to vector<8x32xf32>
    %469 = arith.subf %468, %462 : vector<8x32xf32>
    %470 = arith.mulf %469, %467 : vector<8x32xf32>
    %471 = arith.mulf %462, %450 : vector<8x32xf32>
    %472 = arith.addf %470, %471 : vector<8x32xf32>
    %cst_117 = arith.constant dense<0.000000e+00> : vector<8x96xf32>
    %473 = tpu.matmul %472, %398, %cst_117 {dimension_numbers = #tpu.dot_dimension_numbers<[1], [0], [0], [1], [0, 0, 1, 1], [], []>} : vector<8x32xf32>, vector<32x96xf32>, vector<8x96xf32> -> vector<8x96xf32>
    %474 = arith.addf %473, %402 : vector<8x96xf32>
    %475 = vector.extract_strided_slice %405 {offsets = [24, 0], sizes = [8, 96], strides = [1, 1]} : vector<64x96xf32> to vector<8x96xf32>
    %476 = arith.addf %475, %474 : vector<8x96xf32>
    %477 = vector.extract_strided_slice %476 {offsets = [0, 0], sizes = [8, 64], strides = [1, 1]} : vector<8x96xf32> to vector<8x64xf32>
    %478 = arith.negf %477 : vector<8x64xf32>
    %479 = math.exp %478 : vector<8x64xf32>
    %cst_118 = arith.constant 1.000000e+00 : f32
    %480 = vector.broadcast %cst_118 : f32 to vector<8x64xf32>
    %481 = arith.addf %480, %479 : vector<8x64xf32>
    %482 = arith.divf %480, %481 : vector<8x64xf32>
    %483 = vector.extract_strided_slice %482 {offsets = [0, 0], sizes = [8, 32], strides = [1, 1]} : vector<8x64xf32> to vector<8x32xf32>
    %484 = vector.extract_strided_slice %482 {offsets = [0, 32], sizes = [8, 32], strides = [1, 1]} : vector<8x64xf32> to vector<8x32xf32>
    %485 = vector.extract_strided_slice %475 {offsets = [0, 64], sizes = [8, 32], strides = [1, 1]} : vector<8x96xf32> to vector<8x32xf32>
    %486 = vector.extract_strided_slice %474 {offsets = [0, 64], sizes = [8, 32], strides = [1, 1]} : vector<8x96xf32> to vector<8x32xf32>
    %487 = arith.mulf %483, %486 : vector<8x32xf32>
    %488 = arith.addf %485, %487 : vector<8x32xf32>
    %489 = math.tanh %488 : vector<8x32xf32>
    %cst_119 = arith.constant 1.000000e+00 : f32
    %490 = vector.broadcast %cst_119 : f32 to vector<8x32xf32>
    %491 = arith.subf %490, %484 : vector<8x32xf32>
    %492 = arith.mulf %491, %489 : vector<8x32xf32>
    %493 = arith.mulf %484, %472 : vector<8x32xf32>
    %494 = arith.addf %492, %493 : vector<8x32xf32>
    %cst_120 = arith.constant dense<0.000000e+00> : vector<8x96xf32>
    %495 = tpu.matmul %494, %398, %cst_120 {dimension_numbers = #tpu.dot_dimension_numbers<[1], [0], [0], [1], [0, 0, 1, 1], [], []>} : vector<8x32xf32>, vector<32x96xf32>, vector<8x96xf32> -> vector<8x96xf32>
    %496 = arith.addf %495, %402 : vector<8x96xf32>
    %497 = vector.extract_strided_slice %405 {offsets = [32, 0], sizes = [8, 96], strides = [1, 1]} : vector<64x96xf32> to vector<8x96xf32>
    %498 = arith.addf %497, %496 : vector<8x96xf32>
    %499 = vector.extract_strided_slice %498 {offsets = [0, 0], sizes = [8, 64], strides = [1, 1]} : vector<8x96xf32> to vector<8x64xf32>
    %500 = arith.negf %499 : vector<8x64xf32>
    %501 = math.exp %500 : vector<8x64xf32>
    %cst_121 = arith.constant 1.000000e+00 : f32
    %502 = vector.broadcast %cst_121 : f32 to vector<8x64xf32>
    %503 = arith.addf %502, %501 : vector<8x64xf32>
    %504 = arith.divf %502, %503 : vector<8x64xf32>
    %505 = vector.extract_strided_slice %504 {offsets = [0, 0], sizes = [8, 32], strides = [1, 1]} : vector<8x64xf32> to vector<8x32xf32>
    %506 = vector.extract_strided_slice %504 {offsets = [0, 32], sizes = [8, 32], strides = [1, 1]} : vector<8x64xf32> to vector<8x32xf32>
    %507 = vector.extract_strided_slice %497 {offsets = [0, 64], sizes = [8, 32], strides = [1, 1]} : vector<8x96xf32> to vector<8x32xf32>
    %508 = vector.extract_strided_slice %496 {offsets = [0, 64], sizes = [8, 32], strides = [1, 1]} : vector<8x96xf32> to vector<8x32xf32>
    %509 = arith.mulf %505, %508 : vector<8x32xf32>
    %510 = arith.addf %507, %509 : vector<8x32xf32>
    %511 = math.tanh %510 : vector<8x32xf32>
    %cst_122 = arith.constant 1.000000e+00 : f32
    %512 = vector.broadcast %cst_122 : f32 to vector<8x32xf32>
    %513 = arith.subf %512, %506 : vector<8x32xf32>
    %514 = arith.mulf %513, %511 : vector<8x32xf32>
    %515 = arith.mulf %506, %494 : vector<8x32xf32>
    %516 = arith.addf %514, %515 : vector<8x32xf32>
    %cst_123 = arith.constant dense<0.000000e+00> : vector<8x96xf32>
    %517 = tpu.matmul %516, %398, %cst_123 {dimension_numbers = #tpu.dot_dimension_numbers<[1], [0], [0], [1], [0, 0, 1, 1], [], []>} : vector<8x32xf32>, vector<32x96xf32>, vector<8x96xf32> -> vector<8x96xf32>
    %518 = arith.addf %517, %402 : vector<8x96xf32>
    %519 = vector.extract_strided_slice %405 {offsets = [40, 0], sizes = [8, 96], strides = [1, 1]} : vector<64x96xf32> to vector<8x96xf32>
    %520 = arith.addf %519, %518 : vector<8x96xf32>
    %521 = vector.extract_strided_slice %520 {offsets = [0, 0], sizes = [8, 64], strides = [1, 1]} : vector<8x96xf32> to vector<8x64xf32>
    %522 = arith.negf %521 : vector<8x64xf32>
    %523 = math.exp %522 : vector<8x64xf32>
    %cst_124 = arith.constant 1.000000e+00 : f32
    %524 = vector.broadcast %cst_124 : f32 to vector<8x64xf32>
    %525 = arith.addf %524, %523 : vector<8x64xf32>
    %526 = arith.divf %524, %525 : vector<8x64xf32>
    %527 = vector.extract_strided_slice %526 {offsets = [0, 0], sizes = [8, 32], strides = [1, 1]} : vector<8x64xf32> to vector<8x32xf32>
    %528 = vector.extract_strided_slice %526 {offsets = [0, 32], sizes = [8, 32], strides = [1, 1]} : vector<8x64xf32> to vector<8x32xf32>
    %529 = vector.extract_strided_slice %519 {offsets = [0, 64], sizes = [8, 32], strides = [1, 1]} : vector<8x96xf32> to vector<8x32xf32>
    %530 = vector.extract_strided_slice %518 {offsets = [0, 64], sizes = [8, 32], strides = [1, 1]} : vector<8x96xf32> to vector<8x32xf32>
    %531 = arith.mulf %527, %530 : vector<8x32xf32>
    %532 = arith.addf %529, %531 : vector<8x32xf32>
    %533 = math.tanh %532 : vector<8x32xf32>
    %cst_125 = arith.constant 1.000000e+00 : f32
    %534 = vector.broadcast %cst_125 : f32 to vector<8x32xf32>
    %535 = arith.subf %534, %528 : vector<8x32xf32>
    %536 = arith.mulf %535, %533 : vector<8x32xf32>
    %537 = arith.mulf %528, %516 : vector<8x32xf32>
    %538 = arith.addf %536, %537 : vector<8x32xf32>
    %cst_126 = arith.constant dense<0.000000e+00> : vector<8x96xf32>
    %539 = tpu.matmul %538, %398, %cst_126 {dimension_numbers = #tpu.dot_dimension_numbers<[1], [0], [0], [1], [0, 0, 1, 1], [], []>} : vector<8x32xf32>, vector<32x96xf32>, vector<8x96xf32> -> vector<8x96xf32>
    %540 = arith.addf %539, %402 : vector<8x96xf32>
    %541 = vector.extract_strided_slice %405 {offsets = [48, 0], sizes = [8, 96], strides = [1, 1]} : vector<64x96xf32> to vector<8x96xf32>
    %542 = arith.addf %541, %540 : vector<8x96xf32>
    %543 = vector.extract_strided_slice %542 {offsets = [0, 0], sizes = [8, 64], strides = [1, 1]} : vector<8x96xf32> to vector<8x64xf32>
    %544 = arith.negf %543 : vector<8x64xf32>
    %545 = math.exp %544 : vector<8x64xf32>
    %cst_127 = arith.constant 1.000000e+00 : f32
    %546 = vector.broadcast %cst_127 : f32 to vector<8x64xf32>
    %547 = arith.addf %546, %545 : vector<8x64xf32>
    %548 = arith.divf %546, %547 : vector<8x64xf32>
    %549 = vector.extract_strided_slice %548 {offsets = [0, 0], sizes = [8, 32], strides = [1, 1]} : vector<8x64xf32> to vector<8x32xf32>
    %550 = vector.extract_strided_slice %548 {offsets = [0, 32], sizes = [8, 32], strides = [1, 1]} : vector<8x64xf32> to vector<8x32xf32>
    %551 = vector.extract_strided_slice %541 {offsets = [0, 64], sizes = [8, 32], strides = [1, 1]} : vector<8x96xf32> to vector<8x32xf32>
    %552 = vector.extract_strided_slice %540 {offsets = [0, 64], sizes = [8, 32], strides = [1, 1]} : vector<8x96xf32> to vector<8x32xf32>
    %553 = arith.mulf %549, %552 : vector<8x32xf32>
    %554 = arith.addf %551, %553 : vector<8x32xf32>
    %555 = math.tanh %554 : vector<8x32xf32>
    %cst_128 = arith.constant 1.000000e+00 : f32
    %556 = vector.broadcast %cst_128 : f32 to vector<8x32xf32>
    %557 = arith.subf %556, %550 : vector<8x32xf32>
    %558 = arith.mulf %557, %555 : vector<8x32xf32>
    %559 = arith.mulf %550, %538 : vector<8x32xf32>
    %560 = arith.addf %558, %559 : vector<8x32xf32>
    %cst_129 = arith.constant dense<0.000000e+00> : vector<8x96xf32>
    %561 = tpu.matmul %560, %398, %cst_129 {dimension_numbers = #tpu.dot_dimension_numbers<[1], [0], [0], [1], [0, 0, 1, 1], [], []>} : vector<8x32xf32>, vector<32x96xf32>, vector<8x96xf32> -> vector<8x96xf32>
    %562 = arith.addf %561, %402 : vector<8x96xf32>
    %563 = vector.extract_strided_slice %405 {offsets = [56, 0], sizes = [8, 96], strides = [1, 1]} : vector<64x96xf32> to vector<8x96xf32>
    %564 = arith.addf %563, %562 : vector<8x96xf32>
    %565 = vector.extract_strided_slice %564 {offsets = [0, 0], sizes = [8, 64], strides = [1, 1]} : vector<8x96xf32> to vector<8x64xf32>
    %566 = arith.negf %565 : vector<8x64xf32>
    %567 = math.exp %566 : vector<8x64xf32>
    %cst_130 = arith.constant 1.000000e+00 : f32
    %568 = vector.broadcast %cst_130 : f32 to vector<8x64xf32>
    %569 = arith.addf %568, %567 : vector<8x64xf32>
    %570 = arith.divf %568, %569 : vector<8x64xf32>
    %571 = vector.extract_strided_slice %570 {offsets = [0, 0], sizes = [8, 32], strides = [1, 1]} : vector<8x64xf32> to vector<8x32xf32>
    %572 = vector.extract_strided_slice %570 {offsets = [0, 32], sizes = [8, 32], strides = [1, 1]} : vector<8x64xf32> to vector<8x32xf32>
    %573 = vector.extract_strided_slice %563 {offsets = [0, 64], sizes = [8, 32], strides = [1, 1]} : vector<8x96xf32> to vector<8x32xf32>
    %574 = vector.extract_strided_slice %562 {offsets = [0, 64], sizes = [8, 32], strides = [1, 1]} : vector<8x96xf32> to vector<8x32xf32>
    %575 = arith.mulf %571, %574 : vector<8x32xf32>
    %576 = arith.addf %573, %575 : vector<8x32xf32>
    %577 = math.tanh %576 : vector<8x32xf32>
    %cst_131 = arith.constant 1.000000e+00 : f32
    %578 = vector.broadcast %cst_131 : f32 to vector<8x32xf32>
    %579 = arith.subf %578, %572 : vector<8x32xf32>
    %580 = arith.mulf %579, %577 : vector<8x32xf32>
    %581 = arith.mulf %572, %560 : vector<8x32xf32>
    %582 = arith.addf %580, %581 : vector<8x32xf32>
    %c0_132 = arith.constant 0 : index
    %c0_133 = arith.constant 0 : index
    %583 = vector.load %arg3[%c0_132, %c0_133] : memref<32x128xf32, #tpu.memory_space<vmem>>, vector<32x128xf32>
    %cst_134 = arith.constant dense<0.000000e+00> : vector<8x128xf32>
    %584 = tpu.matmul %582, %583, %cst_134 {dimension_numbers = #tpu.dot_dimension_numbers<[1], [0], [0], [1], [0, 0, 1, 1], [], []>} : vector<8x32xf32>, vector<32x128xf32>, vector<8x128xf32> -> vector<8x128xf32>
    %c0_135 = arith.constant 0 : index
    %c0_136 = arith.constant 0 : index
    %585 = vector.load %arg5[%c0_135, %c0_136] : memref<2x128xf32, #tpu.memory_space<vmem>>, vector<1x128xf32>
    %586 = vector.broadcast %585 : vector<1x128xf32> to vector<8x128xf32>
    %587 = arith.addf %584, %586 : vector<8x128xf32>
    %cst_137 = arith.constant 0.000000e+00 : f32
    %588 = vector.broadcast %cst_137 : f32 to vector<8x128xf32>
    %589 = arith.maximumf %587, %588 : vector<8x128xf32>
    %c0_138 = arith.constant 0 : index
    %c0_139 = arith.constant 0 : index
    %590 = vector.load %arg4[%c0_138, %c0_139] : memref<128x128xf32, #tpu.memory_space<vmem>>, vector<128x128xf32>
    %cst_140 = arith.constant dense<0.000000e+00> : vector<8x128xf32>
    %591 = tpu.matmul %589, %590, %cst_140 {dimension_numbers = #tpu.dot_dimension_numbers<[1], [0], [0], [1], [0, 0, 1, 1], [], []>} : vector<8x128xf32>, vector<128x128xf32>, vector<8x128xf32> -> vector<8x128xf32>
    %c1_141 = arith.constant 1 : index
    %c0_142 = arith.constant 0 : index
    %592 = vector.load %arg5[%c1_141, %c0_142] : memref<2x128xf32, #tpu.memory_space<vmem>>, vector<1x128xf32>
    %593 = vector.broadcast %592 : vector<1x128xf32> to vector<8x128xf32>
    %594 = arith.addf %591, %593 : vector<8x128xf32>
    %c0_143 = arith.constant 0 : index
    %c0_144 = arith.constant 0 : index
    %595 = vector.load %arg6[%c0_143, %c0_144] : memref<8x128xf32, #tpu.memory_space<vmem>>, vector<8x128xf32>
    tpu.vector_store %arg6[%c0_143, %c0_144], %594 {strides = array<i32>} : memref<8x128xf32, #tpu.memory_space<vmem>>, vector<8x128xf32>,
    return
  }
}

</mosaic_0001>

<llo_original>
// kernel: gru_emotion_classifier_forward.1
$region0: #{gru_emotion_classifier_forward.1}
  #allocation0 [shape = 'u32[]', space=smem, size = 0x4, offset = 0x4, fixed_abs, tag = 'smem constant byte address 0x4 - core index']
  #allocation1 [shape = 'u32[72,128]{1,0:T(1,128)}', space=vmem, size = 0x9000, scoped, tag = 'internal scratch']
  #allocation2 [shape = 'f32[64,32]{1,0:T(8,128)}', space=vmem, size = 0x8000, scoped, tag = 'scratch operand']
  %s0 = inlined_call_operand.vmem [shape: f32[64,32], index: 0, kind: input, shape index: {}]
  %s1 = inlined_call_operand.hbm [shape: f32[6,32,96], index: 1, kind: input, shape index: {}]
  %s2 = inlined_call_operand.vmem [shape: f32[6,96], index: 2, kind: input, shape index: {}]
  %s3 = inlined_call_operand.vmem [shape: f32[32,128], index: 3, kind: input, shape index: {}]
  %s4 = inlined_call_operand.hbm [shape: f32[128,128], index: 4, kind: input, shape index: {}]
  %s5 = inlined_call_operand.vmem [shape: f32[2,128], index: 5, kind: input, shape index: {}]
  %s6 = inlined_call_operand.vmem [shape: f32[8,128], index: 6, kind: output, shape index: {}]
  %s7 = sld [smem:[#allocation0]]
  $region42: #{gru_emotion_classifier_forward.1} parent=0
    _
  %s9 = ssub.s32 1, %s7
  %s10 = scalar_select 0, %s9, %s7
  $region1: #{gru_emotion_classifier_forward.1} parent=0
    #allocation3 [shape = 'u8[98304]{0}', space=vmem, size = 0x18000, scoped, tag = 'input window, operand 1, single buffered']
    #allocation4 [shape = 's32[1]{0}', space=sflag, size = 0x4, scoped, tag = 'scoped memory for gru_emotion_classifier_forward.1']
    #allocation5 [shape = 'u8[65536]{0}', space=vmem, size = 0x10000, scoped, tag = 'input window, operand 4, single buffered']
    #allocation6 [shape = 's32[1]{0}', space=sflag, size = 0x4, scoped, tag = 'scoped memory for gru_emotion_classifier_forward.1']
    %11 = vsyncpa [#allocation4], 0
    %12 = vsyncpa [#allocation6], 0
    // Predicated region
    $region2: #{gru_emotion_classifier_forward.1} parent=1 // pred_check
      _
    $region3: #{gru_emotion_classifier_forward.1} parent=1 // pred_check_branch
      %14 = sbr.rel (0) target = $region5
    $region4: #{gru_emotion_classifier_forward.1} parent=1 // pred_region
      _
    $region5: #{gru_emotion_classifier_forward.1} parent=1 // pred_fallthru
      _
    // Predicated region
    $region6: #{gru_emotion_classifier_forward.1} parent=1 // pred_check
      _
    $region7: #{gru_emotion_classifier_forward.1} parent=1 // pred_check_branch
      %16 = sbr.rel (0) target = $region9
    $region8: #{gru_emotion_classifier_forward.1} parent=1 // pred_region
      %18 = vsyncadd [#allocation4], 0
      %s19 = sshll.u32 %s1, 4
      %s20 = int_to_ptr.hbm [resolvable:$true] %s19
      %s21 = sshll.u32 [#allocation3], 4
      %s22 = int_to_ptr.vmem [resolvable:$true] %s21
      %27 = dma.hbm_to_vmem [thread:$0]  %s20, 3072, %s22, [#allocation4], 128, 128, 8
    $region9: #{gru_emotion_classifier_forward.1} parent=1 // pred_fallthru
      _
    // Predicated region
    $region10: #{gru_emotion_classifier_forward.1} parent=1 // pred_check
      _
    $region11: #{gru_emotion_classifier_forward.1} parent=1 // pred_check_branch
      %29 = sbr.rel (0) target = $region13
    $region12: #{gru_emotion_classifier_forward.1} parent=1 // pred_region
      _
    $region13: #{gru_emotion_classifier_forward.1} parent=1 // pred_fallthru
      _
    // Predicated region
    $region14: #{gru_emotion_classifier_forward.1} parent=1 // pred_check
      _
    $region15: #{gru_emotion_classifier_forward.1} parent=1 // pred_check_branch
      %31 = sbr.rel (0) target = $region17
    $region16: #{gru_emotion_classifier_forward.1} parent=1 // pred_region
      _
    $region17: #{gru_emotion_classifier_forward.1} parent=1 // pred_fallthru
      _
    // Predicated region
    $region18: #{gru_emotion_classifier_forward.1} parent=1 // pred_check
      _
    $region19: #{gru_emotion_classifier_forward.1} parent=1 // pred_check_branch
      %33 = sbr.rel (0) target = $region21
    $region20: #{gru_emotion_classifier_forward.1} parent=1 // pred_region
      %35 = vsyncadd [#allocation6], 0
      %s36 = sshll.u32 %s4, 4
      %s37 = int_to_ptr.hbm [resolvable:$true] %s36
      %s38 = sshll.u32 [#allocation5], 4
      %s39 = int_to_ptr.vmem [resolvable:$true] %s38
      %44 = dma.hbm_to_vmem [thread:$0]  %s37, 2048, %s39, [#allocation6], 128, 128, 8
    $region21: #{gru_emotion_classifier_forward.1} parent=1 // pred_fallthru
      _
    // Predicated region
    $region22: #{gru_emotion_classifier_forward.1} parent=1 // pred_check
      _
    $region23: #{gru_emotion_classifier_forward.1} parent=1 // pred_check_branch
      %46 = sbr.rel (0) target = $region25
    $region24: #{gru_emotion_classifier_forward.1} parent=1 // pred_region
      _
    $region25: #{gru_emotion_classifier_forward.1} parent=1 // pred_fallthru
      _
    // Predicated region
    $region26: #{gru_emotion_classifier_forward.1} parent=1 // pred_check
      _
    $region27: #{gru_emotion_classifier_forward.1} parent=1 // pred_check_branch
      %48 = sbr.rel (0) target = $region29
    $region28: #{gru_emotion_classifier_forward.1} parent=1 // pred_region
      %50 = dma.done [#allocation4], 3072
    $region29: #{gru_emotion_classifier_forward.1} parent=1 // pred_fallthru
      _
    // Predicated region
    $region30: #{gru_emotion_classifier_forward.1} parent=1 // pred_check
      _
    $region31: #{gru_emotion_classifier_forward.1} parent=1 // pred_check_branch
      %52 = sbr.rel (0) target = $region33
    $region32: #{gru_emotion_classifier_forward.1} parent=1 // pred_region
      %54 = dma.done [#allocation6], 2048
    $region33: #{gru_emotion_classifier_forward.1} parent=1 // pred_fallthru
      _
    %v55 = vld [vmem:[%s0] sm:$0xff]
    %v56 = vld [vmem:[%s0 + $0x8] sm:$0xff]
    %v57 = vld [vmem:[%s0 + $0x10] sm:$0xff]
    %v58 = vld [vmem:[%s0 + $0x18] sm:$0xff]
    %v59 = vld [vmem:[%s0 + $0x20] sm:$0xff]
    %v60 = vld [vmem:[%s0 + $0x28] sm:$0xff]
    %v61 = vld [vmem:[%s0 + $0x30] sm:$0xff]
    %v62 = vld [vmem:[%s0 + $0x38] sm:$0xff]
    %v63 = vld [vmem:[#allocation3] sm:$0xff]
    %v64 = vld [vmem:[#allocation3 + $0x8] sm:$0xff]
    %v65 = vld [vmem:[#allocation3 + $0x10] sm:$0xff]
    %v66 = vld [vmem:[#allocation3 + $0x18] sm:$0xff]
    %s67 = scalar_lea.vmem [#allocation3], 96
    %v68 = vld [vmem:[%s67] sm:$0xff]
    %v69 = vld [vmem:[%s67 + $0x8] sm:$0xff]
    %v70 = vld [vmem:[%s67 + $0x10] sm:$0xff]
    %v71 = vld [vmem:[%s67 + $0x18] sm:$0xff]
    %v72 = vld [vmem:[%s2] sm:$0x1]
    %v73 = vld [vmem:[%s2 + $0x3] sm:$0x1]
    %v74 = vperm.slane %v73, 0
    %v75 = vperm.slane %v72, 0
    %vm76 = vcmask 261120
    %v78 = vsel %vm76, %v55, 0
    %v81 = vsel %vm76, %v56, 0
    %v84 = vsel %vm76, %v57, 0
    %v87 = vsel %vm76, %v58, 0
    %v90 = vsel %vm76, %v59, 0
    %v93 = vsel %vm76, %v60, 0
    %v96 = vsel %vm76, %v61, 0
    %v99 = vsel %vm76, %v62, 0
    %101 = vmatpush.msra.mxu0 0.0
    %102 = vmatpush.msra.mxu0 0.0
    %103 = vmatpush.msra.mxu0 0.0
    %104 = vmatpush.msra.mxu0 0.0
    %105 = vmatpush.msra.mxu0 0.0
    %106 = vmatpush.msra.mxu0 0.0
    %107 = vmatpush.msra.mxu0 0.0
    %108 = vmatpush.msra.mxu0 0.0
    %109 = vmatpush.msra.mxu0 0.0
    %110 = vmatpush.msra.mxu0 0.0
    %111 = vmatpush.msra.mxu0 0.0
    %112 = vmatpush.msra.mxu0 0.0
    %113 = vmatpush.msra.mxu0 %v66
    %114 = vmatpush.msra.mxu0 %v65
    %115 = vmatpush.msra.mxu0 %v64
    %116 = vmatpush.msra.mxu0 %v63
    %117 = vmatmul.f32.gmra.mxu0 %v78
    %v118 = vpop.f32.mrf.mxu0
    %v119 = vadd.f32 %v75, %v118
    %120 = vmatmul.f32.gmra.mxu0 %v81
    %v121 = vpop.f32.mrf.mxu0
    %v122 = vadd.f32 %v75, %v121
    %123 = vmatmul.f32.gmra.mxu0 %v84
    %v124 = vpop.f32.mrf.mxu0
    %v125 = vadd.f32 %v75, %v124
    %126 = vmatmul.f32.gmra.mxu0 %v87
    %v127 = vpop.f32.mrf.mxu0
    %v128 = vadd.f32 %v75, %v127
    %129 = vmatmul.f32.gmra.mxu0 %v90
    %v130 = vpop.f32.mrf.mxu0
    %v131 = vadd.f32 %v75, %v130
    %132 = vmatmul.f32.gmra.mxu0 %v93
    %v133 = vpop.f32.mrf.mxu0
    %v134 = vadd.f32 %v75, %v133
    %135 = vmatmul.f32.gmra.mxu0 %v96
    %v136 = vpop.f32.mrf.mxu0
    %v137 = vadd.f32 %v75, %v136
    %138 = vmatmul.f32.gmra.mxu0 %v99
    %v139 = vpop.f32.mrf.mxu0
    %v140 = vadd.f32 %v75, %v139
    %141 = vdwg.mxu0
    %v143 = vsel %vm76, 0.0, 0
    %145 = vmatpush.msra.mxu0 0.0
    %146 = vmatpush.msra.mxu0 0.0
    %147 = vmatpush.msra.mxu0 0.0
    %148 = vmatpush.msra.mxu0 0.0
    %149 = vmatpush.msra.mxu0 0.0
    %150 = vmatpush.msra.mxu0 0.0
    %151 = vmatpush.msra.mxu0 0.0
    %152 = vmatpush.msra.mxu0 0.0
    %153 = vmatpush.msra.mxu0 0.0
    %154 = vmatpush.msra.mxu0 0.0
    %155 = vmatpush.msra.mxu0 0.0
    %156 = vmatpush.msra.mxu0 0.0
    %157 = vmatpush.msra.mxu0 %v71
    %158 = vmatpush.msra.mxu0 %v70
    %159 = vmatpush.msra.mxu0 %v69
    %160 = vmatpush.msra.mxu0 %v68
    %161 = vmatmul.f32.gmra.mxu0 %v143
    %v162 = vpop.f32.mrf.mxu0
    %v163 = vadd.f32 %v74, %v162
    %164 = vdwg.mxu0
    %v165 = vadd.f32 %v119, %v163
    %v166 = vxor.u32 %v165, 2147483648
    %v167 = vmul.f32 %v166, 1.442695
    %v168 = vpow.pop %v167
    %v169 = vadd.f32 %v168, 1.0
    %v170 = vrcp.pop %v169
    %v171 = vmul.f32 %v169, %v170
    %v172 = vsub.f32 1.0, %v171
    %v173 = vmul.f32 %v170, %v172
    %v174 = vadd.f32 %v170, %v173
    %vm175 = vweird.f32 %v169
    %vm176 = vweird.f32 %v170
    %vm177 = vmor %vm175, %vm176
    %v178 = vsel %vm177, %v170, %v174
    %v179 = vand.u32 2147483647, %v169
    %vm180 = vcmp.eq.f32.partialorder %v179, 8.507059e+37
    %v181 = vand.u32 %v169, 2147483648
    %v182 = vor.u32 1.1754944e-38, %v181
    %v183 = vsel %vm180, %v182, %v178
    %v184 = vmul.f32 1.0, %v183
    %186 = vrot.lane.b32.xlu0 %v163, 64
    %v187 = vpop.permute.xlu0 %186
    %v189 = vmul.f32 %v184, %v187
    %191 = vrot.lane.b32.xlu0 %v189, 64
    %v192 = vpop.permute.xlu0 %191
    %v194 = vadd.f32 %v119, %v192
    %v195 = vtanh.pop %v194
    %v196 = vsub.f32 1.0, %v184
    %198 = vrot.lane.b32.xlu0 %v195, 96
    %v199 = vpop.permute.xlu0 %198
    %v201 = vmul.f32 %v196, %v199
    %v202 = vmul.f32 %v184, 0.0
    %v203 = vadd.f32 %v201, %v202
    %205 = vrot.lane.b32.xlu0 %v203, 96
    %v206 = vpop.permute.xlu0 %205
    %208 = vst.msk [vmem:[#allocation2] sm:$0xff] %vm76, %v206
    %v209 = vsel %vm76, %v206, 0
    %211 = vmatpush.msra.mxu0 0.0
    %212 = vmatpush.msra.mxu0 0.0
    %213 = vmatpush.msra.mxu0 0.0
    %214 = vmatpush.msra.mxu0 0.0
    %215 = vmatpush.msra.mxu0 0.0
    %216 = vmatpush.msra.mxu0 0.0
    %217 = vmatpush.msra.mxu0 0.0
    %218 = vmatpush.msra.mxu0 0.0
    %219 = vmatpush.msra.mxu0 0.0
    %220 = vmatpush.msra.mxu0 0.0
    %221 = vmatpush.msra.mxu0 0.0
    %222 = vmatpush.msra.mxu0 0.0
    %223 = vmatpush.msra.mxu0 %v71
    %224 = vmatpush.msra.mxu0 %v70
    %225 = vmatpush.msra.mxu0 %v69
    %226 = vmatpush.msra.mxu0 %v68
    %227 = vmatmul.f32.gmra.mxu0 %v209
    %v228 = vpop.f32.mrf.mxu0
    %v229 = vadd.f32 %v74, %v228
    %230 = vdwg.mxu0
    %v231 = vadd.f32 %v122, %v229
    %v232 = vxor.u32 %v231, 2147483648
    %v233 = vmul.f32 %v232, 1.442695
    %v234 = vpow.pop %v233
    %v235 = vadd.f32 %v234, 1.0
    %v236 = vrcp.pop %v235
    %v237 = vmul.f32 %v235, %v236
    %v238 = vsub.f32 1.0, %v237
    %v239 = vmul.f32 %v236, %v238
    %v240 = vadd.f32 %v236, %v239
    %vm241 = vweird.f32 %v235
    %vm242 = vweird.f32 %v236
    %vm243 = vmor %vm241, %vm242
    %v244 = vsel %vm243, %v236, %v240
    %v245 = vand.u32 2147483647, %v235
    %vm246 = vcmp.eq.f32.partialorder %v245, 8.507059e+37
    %v247 = vand.u32 %v235, 2147483648
    %v248 = vor.u32 1.1754944e-38, %v247
    %v249 = vsel %vm246, %v248, %v244
    %v250 = vmul.f32 1.0, %v249
    %252 = vrot.lane.b32.xlu0 %v229, 64
    %v253 = vpop.permute.xlu0 %252
    %v255 = vmul.f32 %v250, %v253
    %257 = vrot.lane.b32.xlu0 %v255, 64
    %v258 = vpop.permute.xlu0 %257
    %v260 = vadd.f32 %v122, %v258
    %v261 = vtanh.pop %v260
    %v262 = vsub.f32 1.0, %v250
    %264 = vrot.lane.b32.xlu0 %v261, 96
    %v265 = vpop.permute.xlu0 %264
    %v267 = vmul.f32 %v262, %v265
    %v268 = vmul.f32 %v250, %v203
    %v269 = vadd.f32 %v267, %v268
    %271 = vrot.lane.b32.xlu0 %v269, 96
    %v272 = vpop.permute.xlu0 %271
    %274 = vst.msk [vmem:[#allocation2 + $0x8] sm:$0xff] %vm76, %v272
    %v275 = vsel %vm76, %v272, 0
    %277 = vmatpush.msra.mxu0 0.0
    %278 = vmatpush.msra.mxu0 0.0
    %279 = vmatpush.msra.mxu0 0.0
    %280 = vmatpush.msra.mxu0 0.0
    %281 = vmatpush.msra.mxu0 0.0
    %282 = vmatpush.msra.mxu0 0.0
    %283 = vmatpush.msra.mxu0 0.0
    %284 = vmatpush.msra.mxu0 0.0
    %285 = vmatpush.msra.mxu0 0.0
    %286 = vmatpush.msra.mxu0 0.0
    %287 = vmatpush.msra.mxu0 0.0
    %288 = vmatpush.msra.mxu0 0.0
    %289 = vmatpush.msra.mxu0 %v71
    %290 = vmatpush.msra.mxu0 %v70
    %291 = vmatpush.msra.mxu0 %v69
    %292 = vmatpush.msra.mxu0 %v68
    %293 = vmatmul.f32.gmra.mxu0 %v275
    %v294 = vpop.f32.mrf.mxu0
    %v295 = vadd.f32 %v74, %v294
    %296 = vdwg.mxu0
    %v297 = vadd.f32 %v125, %v295
    %v298 = vxor.u32 %v297, 2147483648
    %v299 = vmul.f32 %v298, 1.442695
    %v300 = vpow.pop %v299
    %v301 = vadd.f32 %v300, 1.0
    %v302 = vrcp.pop %v301
    %v303 = vmul.f32 %v301, %v302
    %v304 = vsub.f32 1.0, %v303
    %v305 = vmul.f32 %v302, %v304
    %v306 = vadd.f32 %v302, %v305
    %vm307 = vweird.f32 %v301
    %vm308 = vweird.f32 %v302
    %vm309 = vmor %vm307, %vm308
    %v310 = vsel %vm309, %v302, %v306
    %v311 = vand.u32 2147483647, %v301
    %vm312 = vcmp.eq.f32.partialorder %v311, 8.507059e+37
    %v313 = vand.u32 %v301, 2147483648
    %v314 = vor.u32 1.1754944e-38, %v313
    %v315 = vsel %vm312, %v314, %v310
    %v316 = vmul.f32 1.0, %v315
    %318 = vrot.lane.b32.xlu0 %v295, 64
    %v319 = vpop.permute.xlu0 %318
    %v321 = vmul.f32 %v316, %v319
    %323 = vrot.lane.b32.xlu0 %v321, 64
    %v324 = vpop.permute.xlu0 %323
    %v326 = vadd.f32 %v125, %v324
    %v327 = vtanh.pop %v326
    %v328 = vsub.f32 1.0, %v316
    %330 = vrot.lane.b32.xlu0 %v327, 96
    %v331 = vpop.permute.xlu0 %330
    %v333 = vmul.f32 %v328, %v331
    %v334 = vmul.f32 %v316, %v269
    %v335 = vadd.f32 %v333, %v334
    %337 = vrot.lane.b32.xlu0 %v335, 96
    %v338 = vpop.permute.xlu0 %337
    %340 = vst.msk [vmem:[#allocation2 + $0x10] sm:$0xff] %vm76, %v338
    %v341 = vsel %vm76, %v338, 0
    %343 = vmatpush.msra.mxu0 0.0
    %344 = vmatpush.msra.mxu0 0.0
    %345 = vmatpush.msra.mxu0 0.0
    %346 = vmatpush.msra.mxu0 0.0
    %347 = vmatpush.msra.mxu0 0.0
    %348 = vmatpush.msra.mxu0 0.0
    %349 = vmatpush.msra.mxu0 0.0
    %350 = vmatpush.msra.mxu0 0.0
    %351 = vmatpush.msra.mxu0 0.0
    %352 = vmatpush.msra.mxu0 0.0
    %353 = vmatpush.msra.mxu0 0.0
    %354 = vmatpush.msra.mxu0 0.0
    %355 = vmatpush.msra.mxu0 %v71
    %356 = vmatpush.msra.mxu0 %v70
    %357 = vmatpush.msra.mxu0 %v69
    %358 = vmatpush.msra.mxu0 %v68
    %359 = vmatmul.f32.gmra.mxu0 %v341
    %v360 = vpop.f32.mrf.mxu0
    %v361 = vadd.f32 %v74, %v360
    %362 = vdwg.mxu0
    %v363 = vadd.f32 %v128, %v361
    %v364 = vxor.u32 %v363, 2147483648
    %v365 = vmul.f32 %v364, 1.442695
    %v366 = vpow.pop %v365
    %v367 = vadd.f32 %v366, 1.0
    %v368 = vrcp.pop %v367
    %v369 = vmul.f32 %v367, %v368
    %v370 = vsub.f32 1.0, %v369
    %v371 = vmul.f32 %v368, %v370
    %v372 = vadd.f32 %v368, %v371
    %vm373 = vweird.f32 %v367
    %vm374 = vweird.f32 %v368
    %vm375 = vmor %vm373, %vm374
    %v376 = vsel %vm375, %v368, %v372
    %v377 = vand.u32 2147483647, %v367
    %vm378 = vcmp.eq.f32.partialorder %v377, 8.507059e+37
    %v379 = vand.u32 %v367, 2147483648
    %v380 = vor.u32 1.1754944e-38, %v379
    %v381 = vsel %vm378, %v380, %v376
    %v382 = vmul.f32 1.0, %v381
    %384 = vrot.lane.b32.xlu0 %v361, 64
    %v385 = vpop.permute.xlu0 %384
    %v387 = vmul.f32 %v382, %v385
    %389 = vrot.lane.b32.xlu0 %v387, 64
    %v390 = vpop.permute.xlu0 %389
    %v392 = vadd.f32 %v128, %v390
    %v393 = vtanh.pop %v392
    %v394 = vsub.f32 1.0, %v382
    %396 = vrot.lane.b32.xlu0 %v393, 96
    %v397 = vpop.permute.xlu0 %396
    %v399 = vmul.f32 %v394, %v397
    %v400 = vmul.f32 %v382, %v335
    %v401 = vadd.f32 %v399, %v400
    %403 = vrot.lane.b32.xlu0 %v401, 96
    %v404 = vpop.permute.xlu0 %403
    %406 = vst.msk [vmem:[#allocation2 + $0x18] sm:$0xff] %vm76, %v404
    %v407 = vsel %vm76, %v404, 0
    %409 = vmatpush.msra.mxu0 0.0
    %410 = vmatpush.msra.mxu0 0.0
    %411 = vmatpush.msra.mxu0 0.0
    %412 = vmatpush.msra.mxu0 0.0
    %413 = vmatpush.msra.mxu0 0.0
    %414 = vmatpush.msra.mxu0 0.0
    %415 = vmatpush.msra.mxu0 0.0
    %416 = vmatpush.msra.mxu0 0.0
    %417 = vmatpush.msra.mxu0 0.0
    %418 = vmatpush.msra.mxu0 0.0
    %419 = vmatpush.msra.mxu0 0.0
    %420 = vmatpush.msra.mxu0 0.0
    %421 = vmatpush.msra.mxu0 %v71
    %422 = vmatpush.msra.mxu0 %v70
    %423 = vmatpush.msra.mxu0 %v69
    %424 = vmatpush.msra.mxu0 %v68
    %425 = vmatmul.f32.gmra.mxu0 %v407
    %v426 = vpop.f32.mrf.mxu0
    %v427 = vadd.f32 %v74, %v426
    %428 = vdwg.mxu0
    %v429 = vadd.f32 %v131, %v427
    %v430 = vxor.u32 %v429, 2147483648
    %v431 = vmul.f32 %v430, 1.442695
    %v432 = vpow.pop %v431
    %v433 = vadd.f32 %v432, 1.0
    %v434 = vrcp.pop %v433
    %v435 = vmul.f32 %v433, %v434
    %v436 = vsub.f32 1.0, %v435
    %v437 = vmul.f32 %v434, %v436
    %v438 = vadd.f32 %v434, %v437
    %vm439 = vweird.f32 %v433
    %vm440 = vweird.f32 %v434
    %vm441 = vmor %vm439, %vm440
    %v442 = vsel %vm441, %v434, %v438
    %v443 = vand.u32 2147483647, %v433
    %vm444 = vcmp.eq.f32.partialorder %v443, 8.507059e+37
    %v445 = vand.u32 %v433, 2147483648
    %v446 = vor.u32 1.1754944e-38, %v445
    %v447 = vsel %vm444, %v446, %v442
    %v448 = vmul.f32 1.0, %v447
    %450 = vrot.lane.b32.xlu0 %v427, 64
    %v451 = vpop.permute.xlu0 %450
    %v453 = vmul.f32 %v448, %v451
    %455 = vrot.lane.b32.xlu0 %v453, 64
    %v456 = vpop.permute.xlu0 %455
    %v458 = vadd.f32 %v131, %v456
    %v459 = vtanh.pop %v458
    %v460 = vsub.f32 1.0, %v448
    %462 = vrot.lane.b32.xlu0 %v459, 96
    %v463 = vpop.permute.xlu0 %462
    %v465 = vmul.f32 %v460, %v463
    %v466 = vmul.f32 %v448, %v401
    %v467 = vadd.f32 %v465, %v466
    %469 = vrot.lane.b32.xlu0 %v467, 96
    %v470 = vpop.permute.xlu0 %469
    %472 = vst.msk [vmem:[#allocation2 + $0x20] sm:$0xff] %vm76, %v470
    %v473 = vsel %vm76, %v470, 0
    %475 = vmatpush.msra.mxu0 0.0
    %476 = vmatpush.msra.mxu0 0.0
    %477 = vmatpush.msra.mxu0 0.0
    %478 = vmatpush.msra.mxu0 0.0
    %479 = vmatpush.msra.mxu0 0.0
    %480 = vmatpush.msra.mxu0 0.0
    %481 = vmatpush.msra.mxu0 0.0
    %482 = vmatpush.msra.mxu0 0.0
    %483 = vmatpush.msra.mxu0 0.0
    %484 = vmatpush.msra.mxu0 0.0
    %485 = vmatpush.msra.mxu0 0.0
    %486 = vmatpush.msra.mxu0 0.0
    %487 = vmatpush.msra.mxu0 %v71
    %488 = vmatpush.msra.mxu0 %v70
    %489 = vmatpush.msra.mxu0 %v69
    %490 = vmatpush.msra.mxu0 %v68
    %491 = vmatmul.f32.gmra.mxu0 %v473
    %v492 = vpop.f32.mrf.mxu0
    %v493 = vadd.f32 %v74, %v492
    %494 = vdwg.mxu0
    %v495 = vadd.f32 %v134, %v493
    %v496 = vxor.u32 %v495, 2147483648
    %v497 = vmul.f32 %v496, 1.442695
    %v498 = vpow.pop %v497
    %v499 = vadd.f32 %v498, 1.0
    %v500 = vrcp.pop %v499
    %v501 = vmul.f32 %v499, %v500
    %v502 = vsub.f32 1.0, %v501
    %v503 = vmul.f32 %v500, %v502
    %v504 = vadd.f32 %v500, %v503
    %vm505 = vweird.f32 %v499
    %vm506 = vweird.f32 %v500
    %vm507 = vmor %vm505, %vm506
    %v508 = vsel %vm507, %v500, %v504
    %v509 = vand.u32 2147483647, %v499
    %vm510 = vcmp.eq.f32.partialorder %v509, 8.507059e+37
    %v511 = vand.u32 %v499, 2147483648
    %v512 = vor.u32 1.1754944e-38, %v511
    %v513 = vsel %vm510, %v512, %v508
    %v514 = vmul.f32 1.0, %v513
    %516 = vrot.lane.b32.xlu0 %v493, 64
    %v517 = vpop.permute.xlu0 %516
    %v519 = vmul.f32 %v514, %v517
    %521 = vrot.lane.b32.xlu0 %v519, 64
    %v522 = vpop.permute.xlu0 %521
    %v524 = vadd.f32 %v134, %v522
    %v525 = vtanh.pop %v524
    %v526 = vsub.f32 1.0, %v514
    %528 = vrot.lane.b32.xlu0 %v525, 96
    %v529 = vpop.permute.xlu0 %528
    %v531 = vmul.f32 %v526, %v529
    %v532 = vmul.f32 %v514, %v467
    %v533 = vadd.f32 %v531, %v532
    %535 = vrot.lane.b32.xlu0 %v533, 96
    %v536 = vpop.permute.xlu0 %535
    %538 = vst.msk [vmem:[#allocation2 + $0x28] sm:$0xff] %vm76, %v536
    %v539 = vsel %vm76, %v536, 0
    %541 = vmatpush.msra.mxu0 0.0
    %542 = vmatpush.msra.mxu0 0.0
    %543 = vmatpush.msra.mxu0 0.0
    %544 = vmatpush.msra.mxu0 0.0
    %545 = vmatpush.msra.mxu0 0.0
    %546 = vmatpush.msra.mxu0 0.0
    %547 = vmatpush.msra.mxu0 0.0
    %548 = vmatpush.msra.mxu0 0.0
    %549 = vmatpush.msra.mxu0 0.0
    %550 = vmatpush.msra.mxu0 0.0
    %551 = vmatpush.msra.mxu0 0.0
    %552 = vmatpush.msra.mxu0 0.0
    %553 = vmatpush.msra.mxu0 %v71
    %554 = vmatpush.msra.mxu0 %v70
    %555 = vmatpush.msra.mxu0 %v69
    %556 = vmatpush.msra.mxu0 %v68
    %557 = vmatmul.f32.gmra.mxu0 %v539
    %v558 = vpop.f32.mrf.mxu0
    %v559 = vadd.f32 %v74, %v558
    %560 = vdwg.mxu0
    %v561 = vadd.f32 %v137, %v559
    %v562 = vxor.u32 %v561, 2147483648
    %v563 = vmul.f32 %v562, 1.442695
    %v564 = vpow.pop %v563
    %v565 = vadd.f32 %v564, 1.0
    %v566 = vrcp.pop %v565
    %v567 = vmul.f32 %v565, %v566
    %v568 = vsub.f32 1.0, %v567
    %v569 = vmul.f32 %v566, %v568
    %v570 = vadd.f32 %v566, %v569
    %vm571 = vweird.f32 %v565
    %vm572 = vweird.f32 %v566
    %vm573 = vmor %vm571, %vm572
    %v574 = vsel %vm573, %v566, %v570
    %v575 = vand.u32 2147483647, %v565
    %vm576 = vcmp.eq.f32.partialorder %v575, 8.507059e+37
    %v577 = vand.u32 %v565, 2147483648
    %v578 = vor.u32 1.1754944e-38, %v577
    %v579 = vsel %vm576, %v578, %v574
    %v580 = vmul.f32 1.0, %v579
    %582 = vrot.lane.b32.xlu0 %v559, 64
    %v583 = vpop.permute.xlu0 %582
    %v585 = vmul.f32 %v580, %v583
    %587 = vrot.lane.b32.xlu0 %v585, 64
    %v588 = vpop.permute.xlu0 %587
    %v590 = vadd.f32 %v137, %v588
    %v591 = vtanh.pop %v590
    %v592 = vsub.f32 1.0, %v580
    %594 = vrot.lane.b32.xlu0 %v591, 96
    %v595 = vpop.permute.xlu0 %594
    %v597 = vmul.f32 %v592, %v595
    %v598 = vmul.f32 %v580, %v533
    %v599 = vadd.f32 %v597, %v598
    %601 = vrot.lane.b32.xlu0 %v599, 96
    %v602 = vpop.permute.xlu0 %601
    %604 = vst.msk [vmem:[#allocation2 + $0x30] sm:$0xff] %vm76, %v602
    %v605 = vsel %vm76, %v602, 0
    %607 = vmatpush.msra.mxu0 0.0
    %608 = vmatpush.msra.mxu0 0.0
    %609 = vmatpush.msra.mxu0 0.0
    %610 = vmatpush.msra.mxu0 0.0
    %611 = vmatpush.msra.mxu0 0.0
    %612 = vmatpush.msra.mxu0 0.0
    %613 = vmatpush.msra.mxu0 0.0
    %614 = vmatpush.msra.mxu0 0.0
    %615 = vmatpush.msra.mxu0 0.0
    %616 = vmatpush.msra.mxu0 0.0
    %617 = vmatpush.msra.mxu0 0.0
    %618 = vmatpush.msra.mxu0 0.0
    %619 = vmatpush.msra.mxu0 %v71
    %620 = vmatpush.msra.mxu0 %v70
    %621 = vmatpush.msra.mxu0 %v69
    %622 = vmatpush.msra.mxu0 %v68
    %623 = vmatmul.f32.gmra.mxu0 %v605
    %v624 = vpop.f32.mrf.mxu0
    %v625 = vadd.f32 %v74, %v624
    %626 = vdwg.mxu0
    %v627 = vadd.f32 %v140, %v625
    %v628 = vxor.u32 %v627, 2147483648
    %v629 = vmul.f32 %v628, 1.442695
    %v630 = vpow.pop %v629
    %v631 = vadd.f32 %v630, 1.0
    %v632 = vrcp.pop %v631
    %v633 = vmul.f32 %v631, %v632
    %v634 = vsub.f32 1.0, %v633
    %v635 = vmul.f32 %v632, %v634
    %v636 = vadd.f32 %v632, %v635
    %vm637 = vweird.f32 %v631
    %vm638 = vweird.f32 %v632
    %vm639 = vmor %vm637, %vm638
    %v640 = vsel %vm639, %v632, %v636
    %v641 = vand.u32 2147483647, %v631
    %vm642 = vcmp.eq.f32.partialorder %v641, 8.507059e+37
    %v643 = vand.u32 %v631, 2147483648
    %v644 = vor.u32 1.1754944e-38, %v643
    %v645 = vsel %vm642, %v644, %v640
    %v646 = vmul.f32 1.0, %v645
    %648 = vrot.lane.b32.xlu0 %v625, 64
    %v649 = vpop.permute.xlu0 %648
    %v651 = vmul.f32 %v646, %v649
    %653 = vrot.lane.b32.xlu0 %v651, 64
    %v654 = vpop.permute.xlu0 %653
    %v656 = vadd.f32 %v140, %v654
    %v657 = vtanh.pop %v656
    %v658 = vsub.f32 1.0, %v646
    %660 = vrot.lane.b32.xlu0 %v657, 96
    %v661 = vpop.permute.xlu0 %660
    %v663 = vmul.f32 %v658, %v661
    %v664 = vmul.f32 %v646, %v599
    %v665 = vadd.f32 %v663, %v664
    %667 = vrot.lane.b32.xlu0 %v665, 96
    %v668 = vpop.permute.xlu0 %667
    %670 = vst.msk [vmem:[#allocation2 + $0x38] sm:$0xff] %vm76, %v668
    %v671 = vld [vmem:[#allocation2] sm:$0xff]
    %v672 = vld [vmem:[#allocation2 + $0x8] sm:$0xff]
    %v673 = vld [vmem:[#allocation2 + $0x10] sm:$0xff]
    %v674 = vld [vmem:[#allocation2 + $0x18] sm:$0xff]
    %v675 = vld [vmem:[#allocation2 + $0x20] sm:$0xff]
    %v676 = vld [vmem:[#allocation2 + $0x28] sm:$0xff]
    %v677 = vld [vmem:[#allocation2 + $0x30] sm:$0xff]
    %v678 = vld [vmem:[#allocation2 + $0x38] sm:$0xff]
    %s679 = scalar_lea.vmem [#allocation3], 32
    %v680 = vld [vmem:[%s679] sm:$0xff]
    %v681 = vld [vmem:[%s679 + $0x8] sm:$0xff]
    %v682 = vld [vmem:[%s679 + $0x10] sm:$0xff]
    %v683 = vld [vmem:[%s679 + $0x18] sm:$0xff]
    %s684 = scalar_lea.vmem [#allocation3], 128
    %v685 = vld [vmem:[%s684] sm:$0xff]
    %v686 = vld [vmem:[%s684 + $0x8] sm:$0xff]
    %v687 = vld [vmem:[%s684 + $0x10] sm:$0xff]
    %v688 = vld [vmem:[%s684 + $0x18] sm:$0xff]
    %v689 = vld [vmem:[%s2 + $0x1] sm:$0x1]
    %v690 = vld [vmem:[%s2 + $0x4] sm:$0x1]
    %v691 = vperm.slane %v690, 0
    %v692 = vperm.slane %v689, 0
    %v694 = vsel %vm76, %v671, 0
    %v697 = vsel %vm76, %v672, 0
    %v700 = vsel %vm76, %v673, 0
    %v703 = vsel %vm76, %v674, 0
    %v706 = vsel %vm76, %v675, 0
    %v709 = vsel %vm76, %v676, 0
    %v712 = vsel %vm76, %v677, 0
    %v715 = vsel %vm76, %v678, 0
    %717 = vmatpush.msra.mxu0 0.0
    %718 = vmatpush.msra.mxu0 0.0
    %719 = vmatpush.msra.mxu0 0.0
    %720 = vmatpush.msra.mxu0 0.0
    %721 = vmatpush.msra.mxu0 0.0
    %722 = vmatpush.msra.mxu0 0.0
    %723 = vmatpush.msra.mxu0 0.0
    %724 = vmatpush.msra.mxu0 0.0
    %725 = vmatpush.msra.mxu0 0.0
    %726 = vmatpush.msra.mxu0 0.0
    %727 = vmatpush.msra.mxu0 0.0
    %728 = vmatpush.msra.mxu0 0.0
    %729 = vmatpush.msra.mxu0 %v683
    %730 = vmatpush.msra.mxu0 %v682
    %731 = vmatpush.msra.mxu0 %v681
    %732 = vmatpush.msra.mxu0 %v680
    %733 = vmatmul.f32.gmra.mxu0 %v694
    %v734 = vpop.f32.mrf.mxu0
    %v735 = vadd.f32 %v692, %v734
    %736 = vmatmul.f32.gmra.mxu0 %v697
    %v737 = vpop.f32.mrf.mxu0
    %v738 = vadd.f32 %v692, %v737
    %739 = vmatmul.f32.gmra.mxu0 %v700
    %v740 = vpop.f32.mrf.mxu0
    %v741 = vadd.f32 %v692, %v740
    %742 = vmatmul.f32.gmra.mxu0 %v703
    %v743 = vpop.f32.mrf.mxu0
    %v744 = vadd.f32 %v692, %v743
    %745 = vmatmul.f32.gmra.mxu0 %v706
    %v746 = vpop.f32.mrf.mxu0
    %v747 = vadd.f32 %v692, %v746
    %748 = vmatmul.f32.gmra.mxu0 %v709
    %v749 = vpop.f32.mrf.mxu0
    %v750 = vadd.f32 %v692, %v749
    %751 = vmatmul.f32.gmra.mxu0 %v712
    %v752 = vpop.f32.mrf.mxu0
    %v753 = vadd.f32 %v692, %v752
    %754 = vmatmul.f32.gmra.mxu0 %v715
    %v755 = vpop.f32.mrf.mxu0
    %v756 = vadd.f32 %v692, %v755
    %757 = vdwg.mxu0
    %758 = vmatpush.msra.mxu0 0.0
    %759 = vmatpush.msra.mxu0 0.0
    %760 = vmatpush.msra.mxu0 0.0
    %761 = vmatpush.msra.mxu0 0.0
    %762 = vmatpush.msra.mxu0 0.0
    %763 = vmatpush.msra.mxu0 0.0
    %764 = vmatpush.msra.mxu0 0.0
    %765 = vmatpush.msra.mxu0 0.0
    %766 = vmatpush.msra.mxu0 0.0
    %767 = vmatpush.msra.mxu0 0.0
    %768 = vmatpush.msra.mxu0 0.0
    %769 = vmatpush.msra.mxu0 0.0
    %770 = vmatpush.msra.mxu0 %v688
    %771 = vmatpush.msra.mxu0 %v687
    %772 = vmatpush.msra.mxu0 %v686
    %773 = vmatpush.msra.mxu0 %v685
    %774 = vmatmul.f32.gmra.mxu0 %v143
    %v775 = vpop.f32.mrf.mxu0
    %v776 = vadd.f32 %v691, %v775
    %777 = vdwg.mxu0
    %v778 = vadd.f32 %v735, %v776
    %v779 = vxor.u32 %v778, 2147483648
    %v780 = vmul.f32 %v779, 1.442695
    %v781 = vpow.pop %v780
    %v782 = vadd.f32 %v781, 1.0
    %v783 = vrcp.pop %v782
    %v784 = vmul.f32 %v782, %v783
    %v785 = vsub.f32 1.0, %v784
    %v786 = vmul.f32 %v783, %v785
    %v787 = vadd.f32 %v783, %v786
    %vm788 = vweird.f32 %v782
    %vm789 = vweird.f32 %v783
    %vm790 = vmor %vm788, %vm789
    %v791 = vsel %vm790, %v783, %v787
    %v792 = vand.u32 2147483647, %v782
    %vm793 = vcmp.eq.f32.partialorder %v792, 8.507059e+37
    %v794 = vand.u32 %v782, 2147483648
    %v795 = vor.u32 1.1754944e-38, %v794
    %v796 = vsel %vm793, %v795, %v791
    %v797 = vmul.f32 1.0, %v796
    %799 = vrot.lane.b32.xlu0 %v776, 64
    %v800 = vpop.permute.xlu0 %799
    %v802 = vmul.f32 %v797, %v800
    %804 = vrot.lane.b32.xlu0 %v802, 64
    %v805 = vpop.permute.xlu0 %804
    %v807 = vadd.f32 %v735, %v805
    %v808 = vtanh.pop %v807
    %v809 = vsub.f32 1.0, %v797
    %811 = vrot.lane.b32.xlu0 %v808, 96
    %v812 = vpop.permute.xlu0 %811
    %v814 = vmul.f32 %v809, %v812
    %v815 = vmul.f32 %v797, 0.0
    %v816 = vadd.f32 %v814, %v815
    %818 = vrot.lane.b32.xlu0 %v816, 96
    %v819 = vpop.permute.xlu0 %818
    %821 = vst.msk [vmem:[#allocation2] sm:$0xff] %vm76, %v819
    %v822 = vsel %vm76, %v819, 0
    %824 = vmatpush.msra.mxu0 0.0
    %825 = vmatpush.msra.mxu0 0.0
    %826 = vmatpush.msra.mxu0 0.0
    %827 = vmatpush.msra.mxu0 0.0
    %828 = vmatpush.msra.mxu0 0.0
    %829 = vmatpush.msra.mxu0 0.0
    %830 = vmatpush.msra.mxu0 0.0
    %831 = vmatpush.msra.mxu0 0.0
    %832 = vmatpush.msra.mxu0 0.0
    %833 = vmatpush.msra.mxu0 0.0
    %834 = vmatpush.msra.mxu0 0.0
    %835 = vmatpush.msra.mxu0 0.0
    %836 = vmatpush.msra.mxu0 %v688
    %837 = vmatpush.msra.mxu0 %v687
    %838 = vmatpush.msra.mxu0 %v686
    %839 = vmatpush.msra.mxu0 %v685
    %840 = vmatmul.f32.gmra.mxu0 %v822
    %v841 = vpop.f32.mrf.mxu0
    %v842 = vadd.f32 %v691, %v841
    %843 = vdwg.mxu0
    %v844 = vadd.f32 %v738, %v842
    %v845 = vxor.u32 %v844, 2147483648
    %v846 = vmul.f32 %v845, 1.442695
    %v847 = vpow.pop %v846
    %v848 = vadd.f32 %v847, 1.0
    %v849 = vrcp.pop %v848
    %v850 = vmul.f32 %v848, %v849
    %v851 = vsub.f32 1.0, %v850
    %v852 = vmul.f32 %v849, %v851
    %v853 = vadd.f32 %v849, %v852
    %vm854 = vweird.f32 %v848
    %vm855 = vweird.f32 %v849
    %vm856 = vmor %vm854, %vm855
    %v857 = vsel %vm856, %v849, %v853
    %v858 = vand.u32 2147483647, %v848
    %vm859 = vcmp.eq.f32.partialorder %v858, 8.507059e+37
    %v860 = vand.u32 %v848, 2147483648
    %v861 = vor.u32 1.1754944e-38, %v860
    %v862 = vsel %vm859, %v861, %v857
    %v863 = vmul.f32 1.0, %v862
    %865 = vrot.lane.b32.xlu0 %v842, 64
    %v866 = vpop.permute.xlu0 %865
    %v868 = vmul.f32 %v863, %v866
    %870 = vrot.lane.b32.xlu0 %v868, 64
    %v871 = vpop.permute.xlu0 %870
    %v873 = vadd.f32 %v738, %v871
    %v874 = vtanh.pop %v873
    %v875 = vsub.f32 1.0, %v863
    %877 = vrot.lane.b32.xlu0 %v874, 96
    %v878 = vpop.permute.xlu0 %877
    %v880 = vmul.f32 %v875, %v878
    %v881 = vmul.f32 %v863, %v816
    %v882 = vadd.f32 %v880, %v881
    %884 = vrot.lane.b32.xlu0 %v882, 96
    %v885 = vpop.permute.xlu0 %884
    %887 = vst.msk [vmem:[#allocation2 + $0x8] sm:$0xff] %vm76, %v885
    %v888 = vsel %vm76, %v885, 0
    %890 = vmatpush.msra.mxu0 0.0
    %891 = vmatpush.msra.mxu0 0.0
    %892 = vmatpush.msra.mxu0 0.0
    %893 = vmatpush.msra.mxu0 0.0
    %894 = vmatpush.msra.mxu0 0.0
    %895 = vmatpush.msra.mxu0 0.0
    %896 = vmatpush.msra.mxu0 0.0
    %897 = vmatpush.msra.mxu0 0.0
    %898 = vmatpush.msra.mxu0 0.0
    %899 = vmatpush.msra.mxu0 0.0
    %900 = vmatpush.msra.mxu0 0.0
    %901 = vmatpush.msra.mxu0 0.0
    %902 = vmatpush.msra.mxu0 %v688
    %903 = vmatpush.msra.mxu0 %v687
    %904 = vmatpush.msra.mxu0 %v686
    %905 = vmatpush.msra.mxu0 %v685
    %906 = vmatmul.f32.gmra.mxu0 %v888
    %v907 = vpop.f32.mrf.mxu0
    %v908 = vadd.f32 %v691, %v907
    %909 = vdwg.mxu0
    %v910 = vadd.f32 %v741, %v908
    %v911 = vxor.u32 %v910, 2147483648
    %v912 = vmul.f32 %v911, 1.442695
    %v913 = vpow.pop %v912
    %v914 = vadd.f32 %v913, 1.0
    %v915 = vrcp.pop %v914
    %v916 = vmul.f32 %v914, %v915
    %v917 = vsub.f32 1.0, %v916
    %v918 = vmul.f32 %v915, %v917
    %v919 = vadd.f32 %v915, %v918
    %vm920 = vweird.f32 %v914
    %vm921 = vweird.f32 %v915
    %vm922 = vmor %vm920, %vm921
    %v923 = vsel %vm922, %v915, %v919
    %v924 = vand.u32 2147483647, %v914
    %vm925 = vcmp.eq.f32.partialorder %v924, 8.507059e+37
    %v926 = vand.u32 %v914, 2147483648
    %v927 = vor.u32 1.1754944e-38, %v926
    %v928 = vsel %vm925, %v927, %v923
    %v929 = vmul.f32 1.0, %v928
    %931 = vrot.lane.b32.xlu0 %v908, 64
    %v932 = vpop.permute.xlu0 %931
    %v934 = vmul.f32 %v929, %v932
    %936 = vrot.lane.b32.xlu0 %v934, 64
    %v937 = vpop.permute.xlu0 %936
    %v939 = vadd.f32 %v741, %v937
    %v940 = vtanh.pop %v939
    %v941 = vsub.f32 1.0, %v929
    %943 = vrot.lane.b32.xlu0 %v940, 96
    %v944 = vpop.permute.xlu0 %943
    %v946 = vmul.f32 %v941, %v944
    %v947 = vmul.f32 %v929, %v882
    %v948 = vadd.f32 %v946, %v947
    %950 = vrot.lane.b32.xlu0 %v948, 96
    %v951 = vpop.permute.xlu0 %950
    %953 = vst.msk [vmem:[#allocation2 + $0x10] sm:$0xff] %vm76, %v951
    %v954 = vsel %vm76, %v951, 0
    %956 = vmatpush.msra.mxu0 0.0
    %957 = vmatpush.msra.mxu0 0.0
    %958 = vmatpush.msra.mxu0 0.0
    %959 = vmatpush.msra.mxu0 0.0
    %960 = vmatpush.msra.mxu0 0.0
    %961 = vmatpush.msra.mxu0 0.0
    %962 = vmatpush.msra.mxu0 0.0
    %963 = vmatpush.msra.mxu0 0.0
    %964 = vmatpush.msra.mxu0 0.0
    %965 = vmatpush.msra.mxu0 0.0
    %966 = vmatpush.msra.mxu0 0.0
    %967 = vmatpush.msra.mxu0 0.0
    %968 = vmatpush.msra.mxu0 %v688
    %969 = vmatpush.msra.mxu0 %v687
    %970 = vmatpush.msra.mxu0 %v686
    %971 = vmatpush.msra.mxu0 %v685
    %972 = vmatmul.f32.gmra.mxu0 %v954
    %v973 = vpop.f32.mrf.mxu0
    %v974 = vadd.f32 %v691, %v973
    %975 = vdwg.mxu0
    %v976 = vadd.f32 %v744, %v974
    %v977 = vxor.u32 %v976, 2147483648
    %v978 = vmul.f32 %v977, 1.442695
    %v979 = vpow.pop %v978
    %v980 = vadd.f32 %v979, 1.0
    %v981 = vrcp.pop %v980
    %v982 = vmul.f32 %v980, %v981
    %v983 = vsub.f32 1.0, %v982
    %v984 = vmul.f32 %v981, %v983
    %v985 = vadd.f32 %v981, %v984
    %vm986 = vweird.f32 %v980
    %vm987 = vweird.f32 %v981
    %vm988 = vmor %vm986, %vm987
    %v989 = vsel %vm988, %v981, %v985
    %v990 = vand.u32 2147483647, %v980
    %vm991 = vcmp.eq.f32.partialorder %v990, 8.507059e+37
    %v992 = vand.u32 %v980, 2147483648
    %v993 = vor.u32 1.1754944e-38, %v992
    %v994 = vsel %vm991, %v993, %v989
    %v995 = vmul.f32 1.0, %v994
    %997 = vrot.lane.b32.xlu0 %v974, 64
    %v998 = vpop.permute.xlu0 %997
    %v1000 = vmul.f32 %v995, %v998
    %1002 = vrot.lane.b32.xlu0 %v1000, 64
    %v1003 = vpop.permute.xlu0 %1002
    %v1005 = vadd.f32 %v744, %v1003
    %v1006 = vtanh.pop %v1005
    %v1007 = vsub.f32 1.0, %v995
    %1009 = vrot.lane.b32.xlu0 %v1006, 96
    %v1010 = vpop.permute.xlu0 %1009
    %v1012 = vmul.f32 %v1007, %v1010
    %v1013 = vmul.f32 %v995, %v948
    %v1014 = vadd.f32 %v1012, %v1013
    %1016 = vrot.lane.b32.xlu0 %v1014, 96
    %v1017 = vpop.permute.xlu0 %1016
    %1019 = vst.msk [vmem:[#allocation2 + $0x18] sm:$0xff] %vm76, %v1017
    %v1020 = vsel %vm76, %v1017, 0
    %1022 = vmatpush.msra.mxu0 0.0
    %1023 = vmatpush.msra.mxu0 0.0
    %1024 = vmatpush.msra.mxu0 0.0
    %1025 = vmatpush.msra.mxu0 0.0
    %1026 = vmatpush.msra.mxu0 0.0
    %1027 = vmatpush.msra.mxu0 0.0
    %1028 = vmatpush.msra.mxu0 0.0
    %1029 = vmatpush.msra.mxu0 0.0
    %1030 = vmatpush.msra.mxu0 0.0
    %1031 = vmatpush.msra.mxu0 0.0
    %1032 = vmatpush.msra.mxu0 0.0
    %1033 = vmatpush.msra.mxu0 0.0
    %1034 = vmatpush.msra.mxu0 %v688
    %1035 = vmatpush.msra.mxu0 %v687
    %1036 = vmatpush.msra.mxu0 %v686
    %1037 = vmatpush.msra.mxu0 %v685
    %1038 = vmatmul.f32.gmra.mxu0 %v1020
    %v1039 = vpop.f32.mrf.mxu0
    %v1040 = vadd.f32 %v691, %v1039
    %1041 = vdwg.mxu0
    %v1042 = vadd.f32 %v747, %v1040
    %v1043 = vxor.u32 %v1042, 2147483648
    %v1044 = vmul.f32 %v1043, 1.442695
    %v1045 = vpow.pop %v1044
    %v1046 = vadd.f32 %v1045, 1.0
    %v1047 = vrcp.pop %v1046
    %v1048 = vmul.f32 %v1046, %v1047
    %v1049 = vsub.f32 1.0, %v1048
    %v1050 = vmul.f32 %v1047, %v1049
    %v1051 = vadd.f32 %v1047, %v1050
    %vm1052 = vweird.f32 %v1046
    %vm1053 = vweird.f32 %v1047
    %vm1054 = vmor %vm1052, %vm1053
    %v1055 = vsel %vm1054, %v1047, %v1051
    %v1056 = vand.u32 2147483647, %v1046
    %vm1057 = vcmp.eq.f32.partialorder %v1056, 8.507059e+37
    %v1058 = vand.u32 %v1046, 2147483648
    %v1059 = vor.u32 1.1754944e-38, %v1058
    %v1060 = vsel %vm1057, %v1059, %v1055
    %v1061 = vmul.f32 1.0, %v1060
    %1063 = vrot.lane.b32.xlu0 %v1040, 64
    %v1064 = vpop.permute.xlu0 %1063
    %v1066 = vmul.f32 %v1061, %v1064
    %1068 = vrot.lane.b32.xlu0 %v1066, 64
    %v1069 = vpop.permute.xlu0 %1068
    %v1071 = vadd.f32 %v747, %v1069
    %v1072 = vtanh.pop %v1071
    %v1073 = vsub.f32 1.0, %v1061
    %1075 = vrot.lane.b32.xlu0 %v1072, 96
    %v1076 = vpop.permute.xlu0 %1075
    %v1078 = vmul.f32 %v1073, %v1076
    %v1079 = vmul.f32 %v1061, %v1014
    %v1080 = vadd.f32 %v1078, %v1079
    %1082 = vrot.lane.b32.xlu0 %v1080, 96
    %v1083 = vpop.permute.xlu0 %1082
    %1085 = vst.msk [vmem:[#allocation2 + $0x20] sm:$0xff] %vm76, %v1083
    %v1086 = vsel %vm76, %v1083, 0
    %1088 = vmatpush.msra.mxu0 0.0
    %1089 = vmatpush.msra.mxu0 0.0
    %1090 = vmatpush.msra.mxu0 0.0
    %1091 = vmatpush.msra.mxu0 0.0
    %1092 = vmatpush.msra.mxu0 0.0
    %1093 = vmatpush.msra.mxu0 0.0
    %1094 = vmatpush.msra.mxu0 0.0
    %1095 = vmatpush.msra.mxu0 0.0
    %1096 = vmatpush.msra.mxu0 0.0
    %1097 = vmatpush.msra.mxu0 0.0
    %1098 = vmatpush.msra.mxu0 0.0
    %1099 = vmatpush.msra.mxu0 0.0
    %1100 = vmatpush.msra.mxu0 %v688
    %1101 = vmatpush.msra.mxu0 %v687
    %1102 = vmatpush.msra.mxu0 %v686
    %1103 = vmatpush.msra.mxu0 %v685
    %1104 = vmatmul.f32.gmra.mxu0 %v1086
    %v1105 = vpop.f32.mrf.mxu0
    %v1106 = vadd.f32 %v691, %v1105
    %1107 = vdwg.mxu0
    %v1108 = vadd.f32 %v750, %v1106
    %v1109 = vxor.u32 %v1108, 2147483648
    %v1110 = vmul.f32 %v1109, 1.442695
    %v1111 = vpow.pop %v1110
    %v1112 = vadd.f32 %v1111, 1.0
    %v1113 = vrcp.pop %v1112
    %v1114 = vmul.f32 %v1112, %v1113
    %v1115 = vsub.f32 1.0, %v1114
    %v1116 = vmul.f32 %v1113, %v1115
    %v1117 = vadd.f32 %v1113, %v1116
    %vm1118 = vweird.f32 %v1112
    %vm1119 = vweird.f32 %v1113
    %vm1120 = vmor %vm1118, %vm1119
    %v1121 = vsel %vm1120, %v1113, %v1117
    %v1122 = vand.u32 2147483647, %v1112
    %vm1123 = vcmp.eq.f32.partialorder %v1122, 8.507059e+37
    %v1124 = vand.u32 %v1112, 2147483648
    %v1125 = vor.u32 1.1754944e-38, %v1124
    %v1126 = vsel %vm1123, %v1125, %v1121
    %v1127 = vmul.f32 1.0, %v1126
    %1129 = vrot.lane.b32.xlu0 %v1106, 64
    %v1130 = vpop.permute.xlu0 %1129
    %v1132 = vmul.f32 %v1127, %v1130
    %1134 = vrot.lane.b32.xlu0 %v1132, 64
    %v1135 = vpop.permute.xlu0 %1134
    %v1137 = vadd.f32 %v750, %v1135
    %v1138 = vtanh.pop %v1137
    %v1139 = vsub.f32 1.0, %v1127
    %1141 = vrot.lane.b32.xlu0 %v1138, 96
    %v1142 = vpop.permute.xlu0 %1141
    %v1144 = vmul.f32 %v1139, %v1142
    %v1145 = vmul.f32 %v1127, %v1080
    %v1146 = vadd.f32 %v1144, %v1145
    %1148 = vrot.lane.b32.xlu0 %v1146, 96
    %v1149 = vpop.permute.xlu0 %1148
    %1151 = vst.msk [vmem:[#allocation2 + $0x28] sm:$0xff] %vm76, %v1149
    %v1152 = vsel %vm76, %v1149, 0
    %1154 = vmatpush.msra.mxu0 0.0
    %1155 = vmatpush.msra.mxu0 0.0
    %1156 = vmatpush.msra.mxu0 0.0
    %1157 = vmatpush.msra.mxu0 0.0
    %1158 = vmatpush.msra.mxu0 0.0
    %1159 = vmatpush.msra.mxu0 0.0
    %1160 = vmatpush.msra.mxu0 0.0
    %1161 = vmatpush.msra.mxu0 0.0
    %1162 = vmatpush.msra.mxu0 0.0
    %1163 = vmatpush.msra.mxu0 0.0
    %1164 = vmatpush.msra.mxu0 0.0
    %1165 = vmatpush.msra.mxu0 0.0
    %1166 = vmatpush.msra.mxu0 %v688
    %1167 = vmatpush.msra.mxu0 %v687
    %1168 = vmatpush.msra.mxu0 %v686
    %1169 = vmatpush.msra.mxu0 %v685
    %1170 = vmatmul.f32.gmra.mxu0 %v1152
    %v1171 = vpop.f32.mrf.mxu0
    %v1172 = vadd.f32 %v691, %v1171
    %1173 = vdwg.mxu0
    %v1174 = vadd.f32 %v753, %v1172
    %v1175 = vxor.u32 %v1174, 2147483648
    %v1176 = vmul.f32 %v1175, 1.442695
    %v1177 = vpow.pop %v1176
    %v1178 = vadd.f32 %v1177, 1.0
    %v1179 = vrcp.pop %v1178
    %v1180 = vmul.f32 %v1178, %v1179
    %v1181 = vsub.f32 1.0, %v1180
    %v1182 = vmul.f32 %v1179, %v1181
    %v1183 = vadd.f32 %v1179, %v1182
    %vm1184 = vweird.f32 %v1178
    %vm1185 = vweird.f32 %v1179
    %vm1186 = vmor %vm1184, %vm1185
    %v1187 = vsel %vm1186, %v1179, %v1183
    %v1188 = vand.u32 2147483647, %v1178
    %vm1189 = vcmp.eq.f32.partialorder %v1188, 8.507059e+37
    %v1190 = vand.u32 %v1178, 2147483648
    %v1191 = vor.u32 1.1754944e-38, %v1190
    %v1192 = vsel %vm1189, %v1191, %v1187
    %v1193 = vmul.f32 1.0, %v1192
    %1195 = vrot.lane.b32.xlu0 %v1172, 64
    %v1196 = vpop.permute.xlu0 %1195
    %v1198 = vmul.f32 %v1193, %v1196
    %1200 = vrot.lane.b32.xlu0 %v1198, 64
    %v1201 = vpop.permute.xlu0 %1200
    %v1203 = vadd.f32 %v753, %v1201
    %v1204 = vtanh.pop %v1203
    %v1205 = vsub.f32 1.0, %v1193
    %1207 = vrot.lane.b32.xlu0 %v1204, 96
    %v1208 = vpop.permute.xlu0 %1207
    %v1210 = vmul.f32 %v1205, %v1208
    %v1211 = vmul.f32 %v1193, %v1146
    %v1212 = vadd.f32 %v1210, %v1211
    %1214 = vrot.lane.b32.xlu0 %v1212, 96
    %v1215 = vpop.permute.xlu0 %1214
    %1217 = vst.msk [vmem:[#allocation2 + $0x30] sm:$0xff] %vm76, %v1215
    %v1218 = vsel %vm76, %v1215, 0
    %1220 = vmatpush.msra.mxu0 0.0
    %1221 = vmatpush.msra.mxu0 0.0
    %1222 = vmatpush.msra.mxu0 0.0
    %1223 = vmatpush.msra.mxu0 0.0
    %1224 = vmatpush.msra.mxu0 0.0
    %1225 = vmatpush.msra.mxu0 0.0
    %1226 = vmatpush.msra.mxu0 0.0
    %1227 = vmatpush.msra.mxu0 0.0
    %1228 = vmatpush.msra.mxu0 0.0
    %1229 = vmatpush.msra.mxu0 0.0
    %1230 = vmatpush.msra.mxu0 0.0
    %1231 = vmatpush.msra.mxu0 0.0
    %1232 = vmatpush.msra.mxu0 %v688
    %1233 = vmatpush.msra.mxu0 %v687
    %1234 = vmatpush.msra.mxu0 %v686
    %1235 = vmatpush.msra.mxu0 %v685
    %1236 = vmatmul.f32.gmra.mxu0 %v1218
    %v1237 = vpop.f32.mrf.mxu0
    %v1238 = vadd.f32 %v691, %v1237
    %1239 = vdwg.mxu0
    %v1240 = vadd.f32 %v756, %v1238
    %v1241 = vxor.u32 %v1240, 2147483648
    %v1242 = vmul.f32 %v1241, 1.442695
    %v1243 = vpow.pop %v1242
    %v1244 = vadd.f32 %v1243, 1.0
    %v1245 = vrcp.pop %v1244
    %v1246 = vmul.f32 %v1244, %v1245
    %v1247 = vsub.f32 1.0, %v1246
    %v1248 = vmul.f32 %v1245, %v1247
    %v1249 = vadd.f32 %v1245, %v1248
    %vm1250 = vweird.f32 %v1244
    %vm1251 = vweird.f32 %v1245
    %vm1252 = vmor %vm1250, %vm1251
    %v1253 = vsel %vm1252, %v1245, %v1249
    %v1254 = vand.u32 2147483647, %v1244
    %vm1255 = vcmp.eq.f32.partialorder %v1254, 8.507059e+37
    %v1256 = vand.u32 %v1244, 2147483648
    %v1257 = vor.u32 1.1754944e-38, %v1256
    %v1258 = vsel %vm1255, %v1257, %v1253
    %v1259 = vmul.f32 1.0, %v1258
    %1261 = vrot.lane.b32.xlu0 %v1238, 64
    %v1262 = vpop.permute.xlu0 %1261
    %v1264 = vmul.f32 %v1259, %v1262
    %1266 = vrot.lane.b32.xlu0 %v1264, 64
    %v1267 = vpop.permute.xlu0 %1266
    %v1269 = vadd.f32 %v756, %v1267
    %v1270 = vtanh.pop %v1269
    %v1271 = vsub.f32 1.0, %v1259
    %1273 = vrot.lane.b32.xlu0 %v1270, 96
    %v1274 = vpop.permute.xlu0 %1273
    %v1276 = vmul.f32 %v1271, %v1274
    %v1277 = vmul.f32 %v1259, %v1212
    %v1278 = vadd.f32 %v1276, %v1277
    %1280 = vrot.lane.b32.xlu0 %v1278, 96
    %v1281 = vpop.permute.xlu0 %1280
    %1283 = vst.msk [vmem:[#allocation2 + $0x38] sm:$0xff] %vm76, %v1281
    %v1284 = vld [vmem:[#allocation2] sm:$0xff]
    %v1285 = vld [vmem:[#allocation2 + $0x8] sm:$0xff]
    %v1286 = vld [vmem:[#allocation2 + $0x10] sm:$0xff]
    %v1287 = vld [vmem:[#allocation2 + $0x18] sm:$0xff]
    %v1288 = vld [vmem:[#allocation2 + $0x20] sm:$0xff]
    %v1289 = vld [vmem:[#allocation2 + $0x28] sm:$0xff]
    %v1290 = vld [vmem:[#allocation2 + $0x30] sm:$0xff]
    %v1291 = vld [vmem:[#allocation2 + $0x38] sm:$0xff]
    %s1292 = scalar_lea.vmem [#allocation3], 64
    %v1293 = vld [vmem:[%s1292] sm:$0xff]
    %v1294 = vld [vmem:[%s1292 + $0x8] sm:$0xff]
    %v1295 = vld [vmem:[%s1292 + $0x10] sm:$0xff]
    %v1296 = vld [vmem:[%s1292 + $0x18] sm:$0xff]
    %s1297 = scalar_lea.vmem [#allocation3], 160
    %v1298 = vld [vmem:[%s1297] sm:$0xff]
    %v1299 = vld [vmem:[%s1297 + $0x8] sm:$0xff]
    %v1300 = vld [vmem:[%s1297 + $0x10] sm:$0xff]
    %v1301 = vld [vmem:[%s1297 + $0x18] sm:$0xff]
    %v1302 = vld [vmem:[%s2 + $0x2] sm:$0x1]
    %v1303 = vld [vmem:[%s2 + $0x5] sm:$0x1]
    %v1304 = vperm.slane %v1303, 0
    %v1305 = vperm.slane %v1302, 0
    %v1307 = vsel %vm76, %v1284, 0
    %v1310 = vsel %vm76, %v1285, 0
    %v1313 = vsel %vm76, %v1286, 0
    %v1316 = vsel %vm76, %v1287, 0
    %v1319 = vsel %vm76, %v1288, 0
    %v1322 = vsel %vm76, %v1289, 0
    %v1325 = vsel %vm76, %v1290, 0
    %v1328 = vsel %vm76, %v1291, 0
    %1330 = vmatpush.msra.mxu0 0.0
    %1331 = vmatpush.msra.mxu0 0.0
    %1332 = vmatpush.msra.mxu0 0.0
    %1333 = vmatpush.msra.mxu0 0.0
    %1334 = vmatpush.msra.mxu0 0.0
    %1335 = vmatpush.msra.mxu0 0.0
    %1336 = vmatpush.msra.mxu0 0.0
    %1337 = vmatpush.msra.mxu0 0.0
    %1338 = vmatpush.msra.mxu0 0.0
    %1339 = vmatpush.msra.mxu0 0.0
    %1340 = vmatpush.msra.mxu0 0.0
    %1341 = vmatpush.msra.mxu0 0.0
    %1342 = vmatpush.msra.mxu0 %v1296
    %1343 = vmatpush.msra.mxu0 %v1295
    %1344 = vmatpush.msra.mxu0 %v1294
    %1345 = vmatpush.msra.mxu0 %v1293
    %1346 = vmatmul.f32.gmra.mxu0 %v1307
    %v1347 = vpop.f32.mrf.mxu0
    %v1348 = vadd.f32 %v1305, %v1347
    %1349 = vmatmul.f32.gmra.mxu0 %v1310
    %v1350 = vpop.f32.mrf.mxu0
    %v1351 = vadd.f32 %v1305, %v1350
    %1352 = vmatmul.f32.gmra.mxu0 %v1313
    %v1353 = vpop.f32.mrf.mxu0
    %v1354 = vadd.f32 %v1305, %v1353
    %1355 = vmatmul.f32.gmra.mxu0 %v1316
    %v1356 = vpop.f32.mrf.mxu0
    %v1357 = vadd.f32 %v1305, %v1356
    %1358 = vmatmul.f32.gmra.mxu0 %v1319
    %v1359 = vpop.f32.mrf.mxu0
    %v1360 = vadd.f32 %v1305, %v1359
    %1361 = vmatmul.f32.gmra.mxu0 %v1322
    %v1362 = vpop.f32.mrf.mxu0
    %v1363 = vadd.f32 %v1305, %v1362
    %1364 = vmatmul.f32.gmra.mxu0 %v1325
    %v1365 = vpop.f32.mrf.mxu0
    %v1366 = vadd.f32 %v1305, %v1365
    %1367 = vmatmul.f32.gmra.mxu0 %v1328
    %v1368 = vpop.f32.mrf.mxu0
    %v1369 = vadd.f32 %v1305, %v1368
    %1370 = vdwg.mxu0
    %1371 = vmatpush.msra.mxu0 0.0
    %1372 = vmatpush.msra.mxu0 0.0
    %1373 = vmatpush.msra.mxu0 0.0
    %1374 = vmatpush.msra.mxu0 0.0
    %1375 = vmatpush.msra.mxu0 0.0
    %1376 = vmatpush.msra.mxu0 0.0
    %1377 = vmatpush.msra.mxu0 0.0
    %1378 = vmatpush.msra.mxu0 0.0
    %1379 = vmatpush.msra.mxu0 0.0
    %1380 = vmatpush.msra.mxu0 0.0
    %1381 = vmatpush.msra.mxu0 0.0
    %1382 = vmatpush.msra.mxu0 0.0
    %1383 = vmatpush.msra.mxu0 %v1301
    %1384 = vmatpush.msra.mxu0 %v1300
    %1385 = vmatpush.msra.mxu0 %v1299
    %1386 = vmatpush.msra.mxu0 %v1298
    %1387 = vmatmul.f32.gmra.mxu0 %v143
    %v1388 = vpop.f32.mrf.mxu0
    %v1389 = vadd.f32 %v1304, %v1388
    %1390 = vdwg.mxu0
    %v1391 = vadd.f32 %v1348, %v1389
    %v1392 = vxor.u32 %v1391, 2147483648
    %v1393 = vmul.f32 %v1392, 1.442695
    %v1394 = vpow.pop %v1393
    %v1395 = vadd.f32 %v1394, 1.0
    %v1396 = vrcp.pop %v1395
    %v1397 = vmul.f32 %v1395, %v1396
    %v1398 = vsub.f32 1.0, %v1397
    %v1399 = vmul.f32 %v1396, %v1398
    %v1400 = vadd.f32 %v1396, %v1399
    %vm1401 = vweird.f32 %v1395
    %vm1402 = vweird.f32 %v1396
    %vm1403 = vmor %vm1401, %vm1402
    %v1404 = vsel %vm1403, %v1396, %v1400
    %v1405 = vand.u32 2147483647, %v1395
    %vm1406 = vcmp.eq.f32.partialorder %v1405, 8.507059e+37
    %v1407 = vand.u32 %v1395, 2147483648
    %v1408 = vor.u32 1.1754944e-38, %v1407
    %v1409 = vsel %vm1406, %v1408, %v1404
    %v1410 = vmul.f32 1.0, %v1409
    %1412 = vrot.lane.b32.xlu0 %v1389, 64
    %v1413 = vpop.permute.xlu0 %1412
    %v1415 = vmul.f32 %v1410, %v1413
    %1417 = vrot.lane.b32.xlu0 %v1415, 64
    %v1418 = vpop.permute.xlu0 %1417
    %v1420 = vadd.f32 %v1348, %v1418
    %v1421 = vtanh.pop %v1420
    %v1422 = vsub.f32 1.0, %v1410
    %1424 = vrot.lane.b32.xlu0 %v1421, 96
    %v1425 = vpop.permute.xlu0 %1424
    %v1427 = vmul.f32 %v1422, %v1425
    %v1428 = vmul.f32 %v1410, 0.0
    %v1429 = vadd.f32 %v1427, %v1428
    %1431 = vrot.lane.b32.xlu0 %v1429, 96
    %v1432 = vpop.permute.xlu0 %1431
    %v1433 = vsel %vm76, %v1432, 0
    %1435 = vmatpush.msra.mxu0 0.0
    %1436 = vmatpush.msra.mxu0 0.0
    %1437 = vmatpush.msra.mxu0 0.0
    %1438 = vmatpush.msra.mxu0 0.0
    %1439 = vmatpush.msra.mxu0 0.0
    %1440 = vmatpush.msra.mxu0 0.0
    %1441 = vmatpush.msra.mxu0 0.0
    %1442 = vmatpush.msra.mxu0 0.0
    %1443 = vmatpush.msra.mxu0 0.0
    %1444 = vmatpush.msra.mxu0 0.0
    %1445 = vmatpush.msra.mxu0 0.0
    %1446 = vmatpush.msra.mxu0 0.0
    %1447 = vmatpush.msra.mxu0 %v1301
    %1448 = vmatpush.msra.mxu0 %v1300
    %1449 = vmatpush.msra.mxu0 %v1299
    %1450 = vmatpush.msra.mxu0 %v1298
    %1451 = vmatmul.f32.gmra.mxu0 %v1433
    %v1452 = vpop.f32.mrf.mxu0
    %v1453 = vadd.f32 %v1304, %v1452
    %1454 = vdwg.mxu0
    %v1455 = vadd.f32 %v1351, %v1453
    %v1456 = vxor.u32 %v1455, 2147483648
    %v1457 = vmul.f32 %v1456, 1.442695
    %v1458 = vpow.pop %v1457
    %v1459 = vadd.f32 %v1458, 1.0
    %v1460 = vrcp.pop %v1459
    %v1461 = vmul.f32 %v1459, %v1460
    %v1462 = vsub.f32 1.0, %v1461
    %v1463 = vmul.f32 %v1460, %v1462
    %v1464 = vadd.f32 %v1460, %v1463
    %vm1465 = vweird.f32 %v1459
    %vm1466 = vweird.f32 %v1460
    %vm1467 = vmor %vm1465, %vm1466
    %v1468 = vsel %vm1467, %v1460, %v1464
    %v1469 = vand.u32 2147483647, %v1459
    %vm1470 = vcmp.eq.f32.partialorder %v1469, 8.507059e+37
    %v1471 = vand.u32 %v1459, 2147483648
    %v1472 = vor.u32 1.1754944e-38, %v1471
    %v1473 = vsel %vm1470, %v1472, %v1468
    %v1474 = vmul.f32 1.0, %v1473
    %1476 = vrot.lane.b32.xlu0 %v1453, 64
    %v1477 = vpop.permute.xlu0 %1476
    %v1479 = vmul.f32 %v1474, %v1477
    %1481 = vrot.lane.b32.xlu0 %v1479, 64
    %v1482 = vpop.permute.xlu0 %1481
    %v1484 = vadd.f32 %v1351, %v1482
    %v1485 = vtanh.pop %v1484
    %v1486 = vsub.f32 1.0, %v1474
    %1488 = vrot.lane.b32.xlu0 %v1485, 96
    %v1489 = vpop.permute.xlu0 %1488
    %v1491 = vmul.f32 %v1486, %v1489
    %v1492 = vmul.f32 %v1474, %v1429
    %v1493 = vadd.f32 %v1491, %v1492
    %1495 = vrot.lane.b32.xlu0 %v1493, 96
    %v1496 = vpop.permute.xlu0 %1495
    %v1497 = vsel %vm76, %v1496, 0
    %1499 = vmatpush.msra.mxu0 0.0
    %1500 = vmatpush.msra.mxu0 0.0
    %1501 = vmatpush.msra.mxu0 0.0
    %1502 = vmatpush.msra.mxu0 0.0
    %1503 = vmatpush.msra.mxu0 0.0
    %1504 = vmatpush.msra.mxu0 0.0
    %1505 = vmatpush.msra.mxu0 0.0
    %1506 = vmatpush.msra.mxu0 0.0
    %1507 = vmatpush.msra.mxu0 0.0
    %1508 = vmatpush.msra.mxu0 0.0
    %1509 = vmatpush.msra.mxu0 0.0
    %1510 = vmatpush.msra.mxu0 0.0
    %1511 = vmatpush.msra.mxu0 %v1301
    %1512 = vmatpush.msra.mxu0 %v1300
    %1513 = vmatpush.msra.mxu0 %v1299
    %1514 = vmatpush.msra.mxu0 %v1298
    %1515 = vmatmul.f32.gmra.mxu0 %v1497
    %v1516 = vpop.f32.mrf.mxu0
    %v1517 = vadd.f32 %v1304, %v1516
    %1518 = vdwg.mxu0
    %v1519 = vadd.f32 %v1354, %v1517
    %v1520 = vxor.u32 %v1519, 2147483648
    %v1521 = vmul.f32 %v1520, 1.442695
    %v1522 = vpow.pop %v1521
    %v1523 = vadd.f32 %v1522, 1.0
    %v1524 = vrcp.pop %v1523
    %v1525 = vmul.f32 %v1523, %v1524
    %v1526 = vsub.f32 1.0, %v1525
    %v1527 = vmul.f32 %v1524, %v1526
    %v1528 = vadd.f32 %v1524, %v1527
    %vm1529 = vweird.f32 %v1523
    %vm1530 = vweird.f32 %v1524
    %vm1531 = vmor %vm1529, %vm1530
    %v1532 = vsel %vm1531, %v1524, %v1528
    %v1533 = vand.u32 2147483647, %v1523
    %vm1534 = vcmp.eq.f32.partialorder %v1533, 8.507059e+37
    %v1535 = vand.u32 %v1523, 2147483648
    %v1536 = vor.u32 1.1754944e-38, %v1535
    %v1537 = vsel %vm1534, %v1536, %v1532
    %v1538 = vmul.f32 1.0, %v1537
    %1540 = vrot.lane.b32.xlu0 %v1517, 64
    %v1541 = vpop.permute.xlu0 %1540
    %v1543 = vmul.f32 %v1538, %v1541
    %1545 = vrot.lane.b32.xlu0 %v1543, 64
    %v1546 = vpop.permute.xlu0 %1545
    %v1548 = vadd.f32 %v1354, %v1546
    %v1549 = vtanh.pop %v1548
    %v1550 = vsub.f32 1.0, %v1538
    %1552 = vrot.lane.b32.xlu0 %v1549, 96
    %v1553 = vpop.permute.xlu0 %1552
    %v1555 = vmul.f32 %v1550, %v1553
    %v1556 = vmul.f32 %v1538, %v1493
    %v1557 = vadd.f32 %v1555, %v1556
    %1559 = vrot.lane.b32.xlu0 %v1557, 96
    %v1560 = vpop.permute.xlu0 %1559
    %v1561 = vsel %vm76, %v1560, 0
    %1563 = vmatpush.msra.mxu0 0.0
    %1564 = vmatpush.msra.mxu0 0.0
    %1565 = vmatpush.msra.mxu0 0.0
    %1566 = vmatpush.msra.mxu0 0.0
    %1567 = vmatpush.msra.mxu0 0.0
    %1568 = vmatpush.msra.mxu0 0.0
    %1569 = vmatpush.msra.mxu0 0.0
    %1570 = vmatpush.msra.mxu0 0.0
    %1571 = vmatpush.msra.mxu0 0.0
    %1572 = vmatpush.msra.mxu0 0.0
    %1573 = vmatpush.msra.mxu0 0.0
    %1574 = vmatpush.msra.mxu0 0.0
    %1575 = vmatpush.msra.mxu0 %v1301
    %1576 = vmatpush.msra.mxu0 %v1300
    %1577 = vmatpush.msra.mxu0 %v1299
    %1578 = vmatpush.msra.mxu0 %v1298
    %1579 = vmatmul.f32.gmra.mxu0 %v1561
    %v1580 = vpop.f32.mrf.mxu0
    %v1581 = vadd.f32 %v1304, %v1580
    %1582 = vdwg.mxu0
    %v1583 = vadd.f32 %v1357, %v1581
    %v1584 = vxor.u32 %v1583, 2147483648
    %v1585 = vmul.f32 %v1584, 1.442695
    %v1586 = vpow.pop %v1585
    %v1587 = vadd.f32 %v1586, 1.0
    %v1588 = vrcp.pop %v1587
    %v1589 = vmul.f32 %v1587, %v1588
    %v1590 = vsub.f32 1.0, %v1589
    %v1591 = vmul.f32 %v1588, %v1590
    %v1592 = vadd.f32 %v1588, %v1591
    %vm1593 = vweird.f32 %v1587
    %vm1594 = vweird.f32 %v1588
    %vm1595 = vmor %vm1593, %vm1594
    %v1596 = vsel %vm1595, %v1588, %v1592
    %v1597 = vand.u32 2147483647, %v1587
    %vm1598 = vcmp.eq.f32.partialorder %v1597, 8.507059e+37
    %v1599 = vand.u32 %v1587, 2147483648
    %v1600 = vor.u32 1.1754944e-38, %v1599
    %v1601 = vsel %vm1598, %v1600, %v1596
    %v1602 = vmul.f32 1.0, %v1601
    %1604 = vrot.lane.b32.xlu0 %v1581, 64
    %v1605 = vpop.permute.xlu0 %1604
    %v1607 = vmul.f32 %v1602, %v1605
    %1609 = vrot.lane.b32.xlu0 %v1607, 64
    %v1610 = vpop.permute.xlu0 %1609
    %v1612 = vadd.f32 %v1357, %v1610
    %v1613 = vtanh.pop %v1612
    %v1614 = vsub.f32 1.0, %v1602
    %1616 = vrot.lane.b32.xlu0 %v1613, 96
    %v1617 = vpop.permute.xlu0 %1616
    %v1619 = vmul.f32 %v1614, %v1617
    %v1620 = vmul.f32 %v1602, %v1557
    %v1621 = vadd.f32 %v1619, %v1620
    %1623 = vrot.lane.b32.xlu0 %v1621, 96
    %v1624 = vpop.permute.xlu0 %1623
    %v1625 = vsel %vm76, %v1624, 0
    %1627 = vmatpush.msra.mxu0 0.0
    %1628 = vmatpush.msra.mxu0 0.0
    %1629 = vmatpush.msra.mxu0 0.0
    %1630 = vmatpush.msra.mxu0 0.0
    %1631 = vmatpush.msra.mxu0 0.0
    %1632 = vmatpush.msra.mxu0 0.0
    %1633 = vmatpush.msra.mxu0 0.0
    %1634 = vmatpush.msra.mxu0 0.0
    %1635 = vmatpush.msra.mxu0 0.0
    %1636 = vmatpush.msra.mxu0 0.0
    %1637 = vmatpush.msra.mxu0 0.0
    %1638 = vmatpush.msra.mxu0 0.0
    %1639 = vmatpush.msra.mxu0 %v1301
    %1640 = vmatpush.msra.mxu0 %v1300
    %1641 = vmatpush.msra.mxu0 %v1299
    %1642 = vmatpush.msra.mxu0 %v1298
    %1643 = vmatmul.f32.gmra.mxu0 %v1625
    %v1644 = vpop.f32.mrf.mxu0
    %v1645 = vadd.f32 %v1304, %v1644
    %1646 = vdwg.mxu0
    %v1647 = vadd.f32 %v1360, %v1645
    %v1648 = vxor.u32 %v1647, 2147483648
    %v1649 = vmul.f32 %v1648, 1.442695
    %v1650 = vpow.pop %v1649
    %v1651 = vadd.f32 %v1650, 1.0
    %v1652 = vrcp.pop %v1651
    %v1653 = vmul.f32 %v1651, %v1652
    %v1654 = vsub.f32 1.0, %v1653
    %v1655 = vmul.f32 %v1652, %v1654
    %v1656 = vadd.f32 %v1652, %v1655
    %vm1657 = vweird.f32 %v1651
    %vm1658 = vweird.f32 %v1652
    %vm1659 = vmor %vm1657, %vm1658
    %v1660 = vsel %vm1659, %v1652, %v1656
    %v1661 = vand.u32 2147483647, %v1651
    %vm1662 = vcmp.eq.f32.partialorder %v1661, 8.507059e+37
    %v1663 = vand.u32 %v1651, 2147483648
    %v1664 = vor.u32 1.1754944e-38, %v1663
    %v1665 = vsel %vm1662, %v1664, %v1660
    %v1666 = vmul.f32 1.0, %v1665
    %1668 = vrot.lane.b32.xlu0 %v1645, 64
    %v1669 = vpop.permute.xlu0 %1668
    %v1671 = vmul.f32 %v1666, %v1669
    %1673 = vrot.lane.b32.xlu0 %v1671, 64
    %v1674 = vpop.permute.xlu0 %1673
    %v1676 = vadd.f32 %v1360, %v1674
    %v1677 = vtanh.pop %v1676
    %v1678 = vsub.f32 1.0, %v1666
    %1680 = vrot.lane.b32.xlu0 %v1677, 96
    %v1681 = vpop.permute.xlu0 %1680
    %v1683 = vmul.f32 %v1678, %v1681
    %v1684 = vmul.f32 %v1666, %v1621
    %v1685 = vadd.f32 %v1683, %v1684
    %1687 = vrot.lane.b32.xlu0 %v1685, 96
    %v1688 = vpop.permute.xlu0 %1687
    %v1689 = vsel %vm76, %v1688, 0
    %1691 = vmatpush.msra.mxu0 0.0
    %1692 = vmatpush.msra.mxu0 0.0
    %1693 = vmatpush.msra.mxu0 0.0
    %1694 = vmatpush.msra.mxu0 0.0
    %1695 = vmatpush.msra.mxu0 0.0
    %1696 = vmatpush.msra.mxu0 0.0
    %1697 = vmatpush.msra.mxu0 0.0
    %1698 = vmatpush.msra.mxu0 0.0
    %1699 = vmatpush.msra.mxu0 0.0
    %1700 = vmatpush.msra.mxu0 0.0
    %1701 = vmatpush.msra.mxu0 0.0
    %1702 = vmatpush.msra.mxu0 0.0
    %1703 = vmatpush.msra.mxu0 %v1301
    %1704 = vmatpush.msra.mxu0 %v1300
    %1705 = vmatpush.msra.mxu0 %v1299
    %1706 = vmatpush.msra.mxu0 %v1298
    %1707 = vmatmul.f32.gmra.mxu0 %v1689
    %v1708 = vpop.f32.mrf.mxu0
    %v1709 = vadd.f32 %v1304, %v1708
    %1710 = vdwg.mxu0
    %v1711 = vadd.f32 %v1363, %v1709
    %v1712 = vxor.u32 %v1711, 2147483648
    %v1713 = vmul.f32 %v1712, 1.442695
    %v1714 = vpow.pop %v1713
    %v1715 = vadd.f32 %v1714, 1.0
    %v1716 = vrcp.pop %v1715
    %v1717 = vmul.f32 %v1715, %v1716
    %v1718 = vsub.f32 1.0, %v1717
    %v1719 = vmul.f32 %v1716, %v1718
    %v1720 = vadd.f32 %v1716, %v1719
    %vm1721 = vweird.f32 %v1715
    %vm1722 = vweird.f32 %v1716
    %vm1723 = vmor %vm1721, %vm1722
    %v1724 = vsel %vm1723, %v1716, %v1720
    %v1725 = vand.u32 2147483647, %v1715
    %vm1726 = vcmp.eq.f32.partialorder %v1725, 8.507059e+37
    %v1727 = vand.u32 %v1715, 2147483648
    %v1728 = vor.u32 1.1754944e-38, %v1727
    %v1729 = vsel %vm1726, %v1728, %v1724
    %v1730 = vmul.f32 1.0, %v1729
    %1732 = vrot.lane.b32.xlu0 %v1709, 64
    %v1733 = vpop.permute.xlu0 %1732
    %v1735 = vmul.f32 %v1730, %v1733
    %1737 = vrot.lane.b32.xlu0 %v1735, 64
    %v1738 = vpop.permute.xlu0 %1737
    %v1740 = vadd.f32 %v1363, %v1738
    %v1741 = vtanh.pop %v1740
    %v1742 = vsub.f32 1.0, %v1730
    %1744 = vrot.lane.b32.xlu0 %v1741, 96
    %v1745 = vpop.permute.xlu0 %1744
    %v1747 = vmul.f32 %v1742, %v1745
    %v1748 = vmul.f32 %v1730, %v1685
    %v1749 = vadd.f32 %v1747, %v1748
    %1751 = vrot.lane.b32.xlu0 %v1749, 96
    %v1752 = vpop.permute.xlu0 %1751
    %v1753 = vsel %vm76, %v1752, 0
    %1755 = vmatpush.msra.mxu0 0.0
    %1756 = vmatpush.msra.mxu0 0.0
    %1757 = vmatpush.msra.mxu0 0.0
    %1758 = vmatpush.msra.mxu0 0.0
    %1759 = vmatpush.msra.mxu0 0.0
    %1760 = vmatpush.msra.mxu0 0.0
    %1761 = vmatpush.msra.mxu0 0.0
    %1762 = vmatpush.msra.mxu0 0.0
    %1763 = vmatpush.msra.mxu0 0.0
    %1764 = vmatpush.msra.mxu0 0.0
    %1765 = vmatpush.msra.mxu0 0.0
    %1766 = vmatpush.msra.mxu0 0.0
    %1767 = vmatpush.msra.mxu0 %v1301
    %1768 = vmatpush.msra.mxu0 %v1300
    %1769 = vmatpush.msra.mxu0 %v1299
    %1770 = vmatpush.msra.mxu0 %v1298
    %1771 = vmatmul.f32.gmra.mxu0 %v1753
    %v1772 = vpop.f32.mrf.mxu0
    %v1773 = vadd.f32 %v1304, %v1772
    %1774 = vdwg.mxu0
    %v1775 = vadd.f32 %v1366, %v1773
    %v1776 = vxor.u32 %v1775, 2147483648
    %v1777 = vmul.f32 %v1776, 1.442695
    %v1778 = vpow.pop %v1777
    %v1779 = vadd.f32 %v1778, 1.0
    %v1780 = vrcp.pop %v1779
    %v1781 = vmul.f32 %v1779, %v1780
    %v1782 = vsub.f32 1.0, %v1781
    %v1783 = vmul.f32 %v1780, %v1782
    %v1784 = vadd.f32 %v1780, %v1783
    %vm1785 = vweird.f32 %v1779
    %vm1786 = vweird.f32 %v1780
    %vm1787 = vmor %vm1785, %vm1786
    %v1788 = vsel %vm1787, %v1780, %v1784
    %v1789 = vand.u32 2147483647, %v1779
    %vm1790 = vcmp.eq.f32.partialorder %v1789, 8.507059e+37
    %v1791 = vand.u32 %v1779, 2147483648
    %v1792 = vor.u32 1.1754944e-38, %v1791
    %v1793 = vsel %vm1790, %v1792, %v1788
    %v1794 = vmul.f32 1.0, %v1793
    %1796 = vrot.lane.b32.xlu0 %v1773, 64
    %v1797 = vpop.permute.xlu0 %1796
    %v1799 = vmul.f32 %v1794, %v1797
    %1801 = vrot.lane.b32.xlu0 %v1799, 64
    %v1802 = vpop.permute.xlu0 %1801
    %v1804 = vadd.f32 %v1366, %v1802
    %v1805 = vtanh.pop %v1804
    %v1806 = vsub.f32 1.0, %v1794
    %1808 = vrot.lane.b32.xlu0 %v1805, 96
    %v1809 = vpop.permute.xlu0 %1808
    %v1811 = vmul.f32 %v1806, %v1809
    %v1812 = vmul.f32 %v1794, %v1749
    %v1813 = vadd.f32 %v1811, %v1812
    %1815 = vrot.lane.b32.xlu0 %v1813, 96
    %v1816 = vpop.permute.xlu0 %1815
    %v1817 = vsel %vm76, %v1816, 0
    %1819 = vmatpush.msra.mxu0 0.0
    %1820 = vmatpush.msra.mxu0 0.0
    %1821 = vmatpush.msra.mxu0 0.0
    %1822 = vmatpush.msra.mxu0 0.0
    %1823 = vmatpush.msra.mxu0 0.0
    %1824 = vmatpush.msra.mxu0 0.0
    %1825 = vmatpush.msra.mxu0 0.0
    %1826 = vmatpush.msra.mxu0 0.0
    %1827 = vmatpush.msra.mxu0 0.0
    %1828 = vmatpush.msra.mxu0 0.0
    %1829 = vmatpush.msra.mxu0 0.0
    %1830 = vmatpush.msra.mxu0 0.0
    %1831 = vmatpush.msra.mxu0 %v1301
    %1832 = vmatpush.msra.mxu0 %v1300
    %1833 = vmatpush.msra.mxu0 %v1299
    %1834 = vmatpush.msra.mxu0 %v1298
    %1835 = vmatmul.f32.gmra.mxu0 %v1817
    %v1836 = vpop.f32.mrf.mxu0
    %v1837 = vadd.f32 %v1304, %v1836
    %1838 = vdwg.mxu0
    %v1839 = vadd.f32 %v1369, %v1837
    %v1840 = vxor.u32 %v1839, 2147483648
    %v1841 = vmul.f32 %v1840, 1.442695
    %v1842 = vpow.pop %v1841
    %v1843 = vadd.f32 %v1842, 1.0
    %v1844 = vrcp.pop %v1843
    %v1845 = vmul.f32 %v1843, %v1844
    %v1846 = vsub.f32 1.0, %v1845
    %v1847 = vmul.f32 %v1844, %v1846
    %v1848 = vadd.f32 %v1844, %v1847
    %vm1849 = vweird.f32 %v1843
    %vm1850 = vweird.f32 %v1844
    %vm1851 = vmor %vm1849, %vm1850
    %v1852 = vsel %vm1851, %v1844, %v1848
    %v1853 = vand.u32 2147483647, %v1843
    %vm1854 = vcmp.eq.f32.partialorder %v1853, 8.507059e+37
    %v1855 = vand.u32 %v1843, 2147483648
    %v1856 = vor.u32 1.1754944e-38, %v1855
    %v1857 = vsel %vm1854, %v1856, %v1852
    %v1858 = vmul.f32 1.0, %v1857
    %1860 = vrot.lane.b32.xlu0 %v1837, 64
    %v1861 = vpop.permute.xlu0 %1860
    %v1863 = vmul.f32 %v1858, %v1861
    %1865 = vrot.lane.b32.xlu0 %v1863, 64
    %v1866 = vpop.permute.xlu0 %1865
    %v1868 = vadd.f32 %v1369, %v1866
    %v1869 = vtanh.pop %v1868
    %v1870 = vsub.f32 1.0, %v1858
    %1872 = vrot.lane.b32.xlu0 %v1869, 96
    %v1873 = vpop.permute.xlu0 %1872
    %v1875 = vmul.f32 %v1870, %v1873
    %v1876 = vmul.f32 %v1858, %v1813
    %v1877 = vadd.f32 %v1875, %v1876
    %v1878 = vld [vmem:[%s3] sm:$0xff]
    %v1879 = vld [vmem:[%s3 + $0x8] sm:$0xff]
    %v1880 = vld [vmem:[%s3 + $0x10] sm:$0xff]
    %v1881 = vld [vmem:[%s3 + $0x18] sm:$0xff]
    %v1882 = vld [vmem:[%s5] sm:$0x1]
    %v1883 = vperm.slane %v1882, 0
    %1885 = vrot.lane.b32.xlu0 %v1877, 96
    %v1886 = vpop.permute.xlu0 %1885
    %v1887 = vsel %vm76, %v1886, 0
    %1889 = vmatpush.msra.mxu0 0.0
    %1890 = vmatpush.msra.mxu0 0.0
    %1891 = vmatpush.msra.mxu0 0.0
    %1892 = vmatpush.msra.mxu0 0.0
    %1893 = vmatpush.msra.mxu0 0.0
    %1894 = vmatpush.msra.mxu0 0.0
    %1895 = vmatpush.msra.mxu0 0.0
    %1896 = vmatpush.msra.mxu0 0.0
    %1897 = vmatpush.msra.mxu0 0.0
    %1898 = vmatpush.msra.mxu0 0.0
    %1899 = vmatpush.msra.mxu0 0.0
    %1900 = vmatpush.msra.mxu0 0.0
    %1901 = vmatpush.msra.mxu0 %v1881
    %1902 = vmatpush.msra.mxu0 %v1880
    %1903 = vmatpush.msra.mxu0 %v1879
    %1904 = vmatpush.msra.mxu0 %v1878
    %1905 = vmatmul.f32.gmra.mxu0 %v1887
    %v1906 = vpop.f32.mrf.mxu0
    %v1907 = vadd.f32 %v1883, %v1906
    %1908 = vdwg.mxu0
    %v1909 = vmax.f32 %v1907, 0.0
    %v1910 = vld [vmem:[#allocation5] sm:$0xff]
    %v1911 = vld [vmem:[#allocation5 + $0x8] sm:$0xff]
    %v1912 = vld [vmem:[#allocation5 + $0x10] sm:$0xff]
    %v1913 = vld [vmem:[#allocation5 + $0x18] sm:$0xff]
    %v1914 = vld [vmem:[#allocation5 + $0x20] sm:$0xff]
    %v1915 = vld [vmem:[#allocation5 + $0x28] sm:$0xff]
    %v1916 = vld [vmem:[#allocation5 + $0x30] sm:$0xff]
    %v1917 = vld [vmem:[#allocation5 + $0x38] sm:$0xff]
    %v1918 = vld [vmem:[#allocation5 + $0x40] sm:$0xff]
    %v1919 = vld [vmem:[#allocation5 + $0x48] sm:$0xff]
    %v1920 = vld [vmem:[#allocation5 + $0x50] sm:$0xff]
    %v1921 = vld [vmem:[#allocation5 + $0x58] sm:$0xff]
    %v1922 = vld [vmem:[#allocation5 + $0x60] sm:$0xff]
    %v1923 = vld [vmem:[#allocation5 + $0x68] sm:$0xff]
    %v1924 = vld [vmem:[#allocation5 + $0x70] sm:$0xff]
    %v1925 = vld [vmem:[#allocation5 + $0x78] sm:$0xff]
    %v1926 = vld [vmem:[%s5 + $0x1] sm:$0x1]
    %v1927 = vperm.slane %v1926, 0
    %1928 = vmatpush.msra.mxu0 %v1925
    %1929 = vmatpush.msra.mxu0 %v1924
    %1930 = vmatpush.msra.mxu0 %v1923
    %1931 = vmatpush.msra.mxu0 %v1922
    %1932 = vmatpush.msra.mxu0 %v1921
    %1933 = vmatpush.msra.mxu0 %v1920
    %1934 = vmatpush.msra.mxu0 %v1919
    %1935 = vmatpush.msra.mxu0 %v1918
    %1936 = vmatpush.msra.mxu0 %v1917
    %1937 = vmatpush.msra.mxu0 %v1916
    %1938 = vmatpush.msra.mxu0 %v1915
    %1939 = vmatpush.msra.mxu0 %v1914
    %1940 = vmatpush.msra.mxu0 %v1913
    %1941 = vmatpush.msra.mxu0 %v1912
    %1942 = vmatpush.msra.mxu0 %v1911
    %1943 = vmatpush.msra.mxu0 %v1910
    %1944 = vmatmul.f32.gmra.mxu0 %v1909
    %v1945 = vpop.f32.mrf.mxu0
    %v1946 = vadd.f32 %v1927, %v1945
    %1947 = vdwg.mxu0
    %1948 = vst [vmem:[%s6] sm:$0xff] %v1946
    // Predicated region
    $region34: #{gru_emotion_classifier_forward.1} parent=1 // pred_check
      _
    $region35: #{gru_emotion_classifier_forward.1} parent=1 // pred_check_branch
      %1950 = sbr.rel (0) target = $region37
    $region36: #{gru_emotion_classifier_forward.1} parent=1 // pred_region
      _
    $region37: #{gru_emotion_classifier_forward.1} parent=1 // pred_fallthru
      _
    // Predicated region
    $region38: #{gru_emotion_classifier_forward.1} parent=1 // pred_check
      _
    $region39: #{gru_emotion_classifier_forward.1} parent=1 // pred_check_branch
      %1952 = sbr.rel (0) target = $region41
    $region40: #{gru_emotion_classifier_forward.1} parent=1 // pred_region
      _
    $region41: #{gru_emotion_classifier_forward.1} parent=1 // pred_fallthru
      _
    %1953 = vsyncpa [#allocation4], 1
    %1954 = vsyncpa [#allocation6], 1

</llo_original>
